<compile_context>
chip_gen: v6e
topology: v6e:2x2x1
jax: 0.10.0
libtpu: 0.0.40
codegen_flags: <defaults>
</compile_context>

<pallas_src>
import functools

import jax
import jax.numpy as jnp
from jax.experimental import pallas as pl
from jax.experimental.pallas import tpu as pltpu


def cvae_kernel(
    x_ref, c_ref, eps_ref,
    we_ref, be_ref,
    wmulv_ref, bmulv_ref,
    wd1z_ref, wd1c_ref, bd1_ref,
    wd2_ref, bd2_ref,
    out_ref,
):
    f32 = jnp.float32
    bf16 = jnp.bfloat16

    # In-kernel casts: x / condition arrive as f32 blocks; the VPU cast is free
    # under MXU/DMA slack and avoids an extra XLA pass over HBM.
    x = x_ref[...].astype(bf16)      # [TB, input_dim]
    c = c_ref[...].astype(bf16)      # [TB, condition_dim]
    eps = eps_ref[...]               # [TB, latent_dim] f32
    L = eps.shape[-1]

    # ---- encoder: Linear + ReLU (bf16 matmul, f32 accumulation) ----
    h = jnp.dot(x, we_ref[...], preferred_element_type=f32) + be_ref[...]
    h = jnp.maximum(h, 0.0).astype(bf16)

    # ---- fused mu/logvar head: single [H, 2L] matmul ----
    mulv = jnp.dot(h, wmulv_ref[...], preferred_element_type=f32) + bmulv_ref[...]
    mu = mulv[:, :L]
    logvar = mulv[:, L:]

    # ---- reparameterize: z = mu + eps * exp(0.5 * logvar)  (f32) ----
    # Note: on a ragged final batch tile the padded rows go through exp() too;
    # results are masked on writeback so outputs stay correct.
    z = mu + eps * jnp.exp(0.5 * logvar)

    # ---- decoder: cat((z, c), 1) @ W_dec1 == z @ W_dec1[:L] + c @ W_dec1[L:] ----
    d = (jnp.dot(z.astype(bf16), wd1z_ref[...], preferred_element_type=f32)
         + jnp.dot(c, wd1c_ref[...], preferred_element_type=f32)
         + bd1_ref[...])
    d = jnp.maximum(d, 0.0).astype(bf16)
    recon = jnp.dot(d, wd2_ref[...], preferred_element_type=f32) + bd2_ref[...]

    # ---- single lane-dense output slab: [recon | mu | logvar] ----
    out_ref[...] = jnp.concatenate([recon, mulv], axis=-1).astype(out_ref.dtype)


def _round_up(n, m):
    return ((n + m - 1) // m) * m


@functools.partial(jax.jit, static_argnames=("block_b",))
def cvae_forward(x, condition, eps, params, *, block_b=1024):
    B, input_dim = x.shape
    condition_dim = condition.shape[1]
    latent_dim = eps.shape[1]
    hidden = params["w_enc"].shape[1]
    out_feat = input_dim + 2 * latent_dim

    # Batch tile: 16-row aligned (bf16 sublane packing). If B is big enough,
    # split into at least two tiles so both v7x TensorCores get work.
    if B <= 16:
        tb = B
    else:
        cap = max(16, (block_b // 16) * 16)
        tb = min(cap, _round_up(pl.cdiv(B, 2), 16))
    grid = (pl.cdiv(B, tb),)

    weight_args = (
        params["w_enc"], params["b_enc"],
        params["w_mulv"], params["b_mulv"],
        params["w_dec1_z"], params["w_dec1_c"], params["b_dec1"],
        params["w_dec2"], params["b_dec2"],
    )
    args = (x, condition, eps) + weight_args

    def tile_spec(feat):
        # batch-tiled activation / output block, double-buffered over the grid
        return pl.BlockSpec((tb, feat), lambda i: (i, 0))

    def resident_spec(arr):
        # constant index_map -> fetched once, stays resident in VMEM;
        # single-buffered so weights don't pay the 2x pipelining footprint.
        return pl.BlockSpec(arr.shape, lambda i: (0,) * arr.ndim,
                            pipeline_mode=pl.Buffered(1))

    in_specs = (
        [tile_spec(input_dim), tile_spec(condition_dim), tile_spec(latent_dim)]
        + [resident_spec(a) for a in weight_args]
    )
    out_specs = tile_spec(out_feat)
    out_shape = jax.ShapeDtypeStruct((B, out_feat), jnp.float32)

    # ---- VMEM budget: 1x resident weights + 2x (double-buffered) act tiles ----
    def nbytes(a):
        return int(a.size) * int(jnp.dtype(a.dtype).itemsize)

    weight_bytes = sum(nbytes(a) for a in weight_args)
    act_in_tile = tb * (input_dim + condition_dim + latent_dim) * 4
    act_out_tile = tb * out_feat * 4
    vmem_need = weight_bytes + 2 * (act_in_tile + act_out_tile) + (4 << 20)
    try:
        vmem_cap = int(pltpu.get_tpu_info().vmem_capacity_bytes)
    except Exception:
        vmem_cap = 64 << 20  # conservative: v7x per-TensorCore VMEM
    vmem_limit = max(1 << 20, min(vmem_need, vmem_cap - (8 << 20)))

    # ---- advisory cost estimate for the XLA scheduler ----
    flops = 2 * B * hidden * (
        input_dim + 2 * latent_dim + latent_dim + condition_dim + input_dim
    )
    bytes_accessed = sum(nbytes(a) for a in args) + B * out_feat * 4
    cost = pl.CostEstimate(
        flops=int(flops),
        transcendentals=int(B * latent_dim),
        bytes_accessed=int(bytes_accessed),
    )

    out = pl.pallas_call(
        cvae_kernel,
        out_shape=out_shape,
        grid=grid,
        in_specs=in_specs,
        out_specs=out_specs,
        compiler_params=pltpu.CompilerParams(
            dimension_semantics=("parallel",),
            vmem_limit_bytes=int(vmem_limit),
        ),
        cost_estimate=cost,
    )(*args)

    recon = out[:, :input_dim]
    mu = out[:, input_dim:input_dim + latent_dim]
    logvar = out[:, input_dim + latent_dim:]
    return recon, mu, logvar


def init_params(key, input_dim, latent_dim, condition_dim, hidden):
    """PyTorch-Linear-style init (U[-1/sqrt(fan_in), 1/sqrt(fan_in)]).
    Weights stored as [in_features, out_features] (PyTorch W^T), bf16 for the
    MXU; biases kept f32 (added to f32 accumulators)."""
    def linear(k, fan_in, fan_out):
        kw, kb = jax.random.split(k)
        bound = 1.0 / jnp.sqrt(jnp.float32(fan_in))
        w = jax.random.uniform(kw, (fan_in, fan_out), jnp.float32, -bound, bound)
        b = jax.random.uniform(kb, (1, fan_out), jnp.float32, -bound, bound)
        return w, b

    k = jax.random.split(key, 5)
    w_enc, b_enc = linear(k[0], input_dim, hidden)
    w_mu, b_mu = linear(k[1], hidden, latent_dim)
    w_lv, b_lv = linear(k[2], hidden, latent_dim)
    w_dec1, b_dec1 = linear(k[3], latent_dim + condition_dim, hidden)
    w_dec2, b_dec2 = linear(k[4], hidden, input_dim)

    bf16 = jnp.bfloat16
    return {
        "w_enc": w_enc.astype(bf16), "b_enc": b_enc,
        # fused mu/logvar head: [H, 2L] weight, [1, 2L] bias
        "w_mulv": jnp.concatenate([w_mu, w_lv], axis=1).astype(bf16),
        "b_mulv": jnp.concatenate([b_mu, b_lv], axis=1),
        # decoder first-layer weight split into z-part and condition-part
        "w_dec1_z": w_dec1[:latent_dim].astype(bf16),
        "w_dec1_c": w_dec1[latent_dim:].astype(bf16),
        "b_dec1": b_dec1,
        "w_dec2": w_dec2.astype(bf16), "b_dec2": b_dec2,
    }


def reference_forward(x, condition, eps, params):
    """Pure-JAX reference with identical numerics (bf16 matmuls, f32 accumulation)."""
    f32, bf16 = jnp.float32, jnp.bfloat16
    xb = x.astype(bf16)
    cb = condition.astype(bf16)
    L = eps.shape[-1]

    h = jnp.maximum(
        jnp.dot(xb, params["w_enc"], preferred_element_type=f32) + params["b_enc"], 0.0)
    mulv = jnp.dot(h.astype(bf16), params["w_mulv"],
                   preferred_element_type=f32) + params["b_mulv"]
    mu, logvar = mulv[:, :L], mulv[:, L:]
    z = mu + eps * jnp.exp(0.5 * logvar)
    d = jnp.maximum(
        jnp.dot(z.astype(bf16), params["w_dec1_z"], preferred_element_type=f32)
        + jnp.dot(cb, params["w_dec1_c"], preferred_element_type=f32)
        + params["b_dec1"], 0.0)
    recon = jnp.dot(d.astype(bf16), params["w_dec2"],
                    preferred_element_type=f32) + params["b_dec2"]
    return recon, mu, logvar


if __name__ == "__main__":
    # Small shapes consistent with the module's features-last forward.
    B = 64
    input_dim = 16
    latent_dim = 8
    condition_dim = 8
    hidden = 512  # hidden_layer_size from the reference module

    key = jax.random.PRNGKey(0)
    kx, kc, keps, kp = jax.random.split(key, 4)

    x = jax.random.normal(kx, (B, input_dim), jnp.float32)
    condition = jax.random.normal(kc, (B, condition_dim), jnp.float32)
    # eps plays the role of torch.randn_like(std) in reparameterize (deterministic here).
    eps = jax.random.normal(keps, (B, latent_dim), jnp.float32)

    params = init_params(kp, input_dim, latent_dim, condition_dim, hidden)

    # Default block_b splits B=64 into two 32-row tiles -> 2-step "parallel" grid
    # (exercises pipelining and v7x dual-TensorCore sharding).
    recon, mu, logvar = cvae_forward(x, condition, eps, params)
    jax.block_until_ready((recon, mu, logvar))

    # sanity-check against pure-JAX reference (same bf16/f32 mixed precision)
    r_ref, mu_ref, lv_ref = reference_forward(x, condition, eps, params)
    assert jnp.allclose(recon, r_ref, atol=3e-2, rtol=3e-2)
    assert jnp.allclose(mu, mu_ref, atol=3e-2, rtol=3e-2)
    assert jnp.allclose(logvar, lv_ref, atol=3e-2, rtol=3e-2)

    print("KERNEL_OK")
</pallas_src>

<mosaic_0001>
module attributes {stable_mosaic.version = 11 : i64} {
  func.func @cvae_kernel(%arg0: i32, %arg1: memref<32x16xf32, #tpu.memory_space<vmem>>, %arg2: memref<32x8xf32, #tpu.memory_space<vmem>>, %arg3: memref<32x8xf32, #tpu.memory_space<vmem>>, %arg4: memref<16x512xbf16, #tpu.memory_space<vmem>>, %arg5: memref<1x512xf32, #tpu.memory_space<vmem>>, %arg6: memref<512x16xbf16, #tpu.memory_space<vmem>>, %arg7: memref<1x16xf32, #tpu.memory_space<vmem>>, %arg8: memref<8x512xbf16, #tpu.memory_space<vmem>>, %arg9: memref<8x512xbf16, #tpu.memory_space<vmem>>, %arg10: memref<1x512xf32, #tpu.memory_space<vmem>>, %arg11: memref<512x16xbf16, #tpu.memory_space<vmem>>, %arg12: memref<1x16xf32, #tpu.memory_space<vmem>>, %arg13: memref<32x32xf32, #tpu.memory_space<vmem>>) attributes {dimension_semantics = [#tpu.dimension_semantics<parallel>], iteration_bounds = array<i64: 2>, scalar_prefetch = 0 : i64, scratch_operands = 0 : i64, tpu.core_type = #tpu.core_type<tc>, window_params = [{transform_indices = @transform_0, window_bounds = array<i64: 32, 16>}, {transform_indices = @transform_1, window_bounds = array<i64: 32, 8>}, {transform_indices = @transform_2, window_bounds = array<i64: 32, 8>}, {pipeline_mode = #tpu.pipeline_mode<synchronous>, transform_indices = @transform_3, window_bounds = array<i64: 16, 512>}, {pipeline_mode = #tpu.pipeline_mode<synchronous>, transform_indices = @transform_4, window_bounds = array<i64: 1, 512>}, {pipeline_mode = #tpu.pipeline_mode<synchronous>, transform_indices = @transform_5, window_bounds = array<i64: 512, 16>}, {pipeline_mode = #tpu.pipeline_mode<synchronous>, transform_indices = @transform_6, window_bounds = array<i64: 1, 16>}, {pipeline_mode = #tpu.pipeline_mode<synchronous>, transform_indices = @transform_7, window_bounds = array<i64: 8, 512>}, {pipeline_mode = #tpu.pipeline_mode<synchronous>, transform_indices = @transform_8, window_bounds = array<i64: 8, 512>}, {pipeline_mode = #tpu.pipeline_mode<synchronous>, transform_indices = @transform_9, window_bounds = array<i64: 1, 512>}, {pipeline_mode = #tpu.pipeline_mode<synchronous>, transform_indices = @transform_10, window_bounds = array<i64: 512, 16>}, {pipeline_mode = #tpu.pipeline_mode<synchronous>, transform_indices = @transform_11, window_bounds = array<i64: 1, 16>}, {transform_indices = @transform_12, window_bounds = array<i64: 32, 32>}]} {
    %c0 = arith.constant 0 : index
    %c0_0 = arith.constant 0 : index
    %0 = vector.load %arg1[%c0, %c0_0] : memref<32x16xf32, #tpu.memory_space<vmem>>, vector<32x16xf32>
    %1 = arith.truncf %0 : vector<32x16xf32> to vector<32x16xbf16>
    %c0_1 = arith.constant 0 : index
    %c0_2 = arith.constant 0 : index
    %2 = vector.load %arg2[%c0_1, %c0_2] : memref<32x8xf32, #tpu.memory_space<vmem>>, vector<32x8xf32>
    %3 = arith.truncf %2 : vector<32x8xf32> to vector<32x8xbf16>
    %c0_3 = arith.constant 0 : index
    %c0_4 = arith.constant 0 : index
    %4 = vector.load %arg3[%c0_3, %c0_4] : memref<32x8xf32, #tpu.memory_space<vmem>>, vector<32x8xf32>
    %c0_5 = arith.constant 0 : index
    %c0_6 = arith.constant 0 : index
    %5 = vector.load %arg4[%c0_5, %c0_6] : memref<16x512xbf16, #tpu.memory_space<vmem>>, vector<16x512xbf16>
    %cst = arith.constant dense<0.000000e+00> : vector<32x512xf32>
    %6 = tpu.matmul %1, %5, %cst {dimension_numbers = #tpu.dot_dimension_numbers<[1], [0], [0], [1], [0, 0, 1, 1], [], []>} : vector<32x16xbf16>, vector<16x512xbf16>, vector<32x512xf32> -> vector<32x512xf32>
    %c0_7 = arith.constant 0 : index
    %c0_8 = arith.constant 0 : index
    %7 = vector.load %arg5[%c0_7, %c0_8] : memref<1x512xf32, #tpu.memory_space<vmem>>, vector<1x512xf32>
    %8 = vector.broadcast %7 : vector<1x512xf32> to vector<32x512xf32>
    %9 = arith.addf %6, %8 : vector<32x512xf32>
    %cst_9 = arith.constant 0.000000e+00 : f32
    %10 = vector.broadcast %cst_9 : f32 to vector<32x512xf32>
    %11 = arith.maximumf %9, %10 : vector<32x512xf32>
    %12 = arith.truncf %11 : vector<32x512xf32> to vector<32x512xbf16>
    %c0_10 = arith.constant 0 : index
    %c0_11 = arith.constant 0 : index
    %13 = vector.load %arg6[%c0_10, %c0_11] : memref<512x16xbf16, #tpu.memory_space<vmem>>, vector<512x16xbf16>
    %cst_12 = arith.constant dense<0.000000e+00> : vector<32x16xf32>
    %14 = tpu.matmul %12, %13, %cst_12 {dimension_numbers = #tpu.dot_dimension_numbers<[1], [0], [0], [1], [0, 0, 1, 1], [], []>} : vector<32x512xbf16>, vector<512x16xbf16>, vector<32x16xf32> -> vector<32x16xf32>
    %c0_13 = arith.constant 0 : index
    %c0_14 = arith.constant 0 : index
    %15 = vector.load %arg7[%c0_13, %c0_14] : memref<1x16xf32, #tpu.memory_space<vmem>>, vector<1x16xf32>
    %16 = vector.broadcast %15 : vector<1x16xf32> to vector<32x16xf32>
    %17 = arith.addf %14, %16 : vector<32x16xf32>
    %18 = vector.extract_strided_slice %17 {offsets = [0, 0], sizes = [32, 8], strides = [1, 1]} : vector<32x16xf32> to vector<32x8xf32>
    %19 = vector.extract_strided_slice %17 {offsets = [0, 8], sizes = [32, 8], strides = [1, 1]} : vector<32x16xf32> to vector<32x8xf32>
    %cst_15 = arith.constant 5.000000e-01 : f32
    %20 = vector.broadcast %cst_15 : f32 to vector<32x8xf32>
    %21 = arith.mulf %20, %19 : vector<32x8xf32>
    %22 = math.exp %21 : vector<32x8xf32>
    %23 = arith.mulf %4, %22 : vector<32x8xf32>
    %24 = arith.addf %18, %23 : vector<32x8xf32>
    %25 = arith.truncf %24 : vector<32x8xf32> to vector<32x8xbf16>
    %c0_16 = arith.constant 0 : index
    %c0_17 = arith.constant 0 : index
    %26 = vector.load %arg8[%c0_16, %c0_17] : memref<8x512xbf16, #tpu.memory_space<vmem>>, vector<8x512xbf16>
    %cst_18 = arith.constant dense<0.000000e+00> : vector<32x512xf32>
    %27 = tpu.matmul %25, %26, %cst_18 {dimension_numbers = #tpu.dot_dimension_numbers<[1], [0], [0], [1], [0, 0, 1, 1], [], []>} : vector<32x8xbf16>, vector<8x512xbf16>, vector<32x512xf32> -> vector<32x512xf32>
    %c0_19 = arith.constant 0 : index
    %c0_20 = arith.constant 0 : index
    %28 = vector.load %arg9[%c0_19, %c0_20] : memref<8x512xbf16, #tpu.memory_space<vmem>>, vector<8x512xbf16>
    %cst_21 = arith.constant dense<0.000000e+00> : vector<32x512xf32>
    %29 = tpu.matmul %3, %28, %cst_21 {dimension_numbers = #tpu.dot_dimension_numbers<[1], [0], [0], [1], [0, 0, 1, 1], [], []>} : vector<32x8xbf16>, vector<8x512xbf16>, vector<32x512xf32> -> vector<32x512xf32>
    %30 = arith.addf %27, %29 : vector<32x512xf32>
    %c0_22 = arith.constant 0 : index
    %c0_23 = arith.constant 0 : index
    %31 = vector.load %arg10[%c0_22, %c0_23] : memref<1x512xf32, #tpu.memory_space<vmem>>, vector<1x512xf32>
    %32 = vector.broadcast %31 : vector<1x512xf32> to vector<32x512xf32>
    %33 = arith.addf %30, %32 : vector<32x512xf32>
    %cst_24 = arith.constant 0.000000e+00 : f32
    %34 = vector.broadcast %cst_24 : f32 to vector<32x512xf32>
    %35 = arith.maximumf %33, %34 : vector<32x512xf32>
    %36 = arith.truncf %35 : vector<32x512xf32> to vector<32x512xbf16>
    %c0_25 = arith.constant 0 : index
    %c0_26 = arith.constant 0 : index
    %37 = vector.load %arg11[%c0_25, %c0_26] : memref<512x16xbf16, #tpu.memory_space<vmem>>, vector<512x16xbf16>
    %cst_27 = arith.constant dense<0.000000e+00> : vector<32x16xf32>
    %38 = tpu.matmul %36, %37, %cst_27 {dimension_numbers = #tpu.dot_dimension_numbers<[1], [0], [0], [1], [0, 0, 1, 1], [], []>} : vector<32x512xbf16>, vector<512x16xbf16>, vector<32x16xf32> -> vector<32x16xf32>
    %c0_28 = arith.constant 0 : index
    %c0_29 = arith.constant 0 : index
    %39 = vector.load %arg12[%c0_28, %c0_29] : memref<1x16xf32, #tpu.memory_space<vmem>>, vector<1x16xf32>
    %40 = vector.broadcast %39 : vector<1x16xf32> to vector<32x16xf32>
    %41 = arith.addf %38, %40 : vector<32x16xf32>
    %42 = tpu.concatenate %41, %17 in 1 : vector<32x16xf32>, vector<32x16xf32> -> vector<32x32xf32>
    %c0_30 = arith.constant 0 : index
    %c0_31 = arith.constant 0 : index
    %43 = vector.load %arg13[%c0_30, %c0_31] : memref<32x32xf32, #tpu.memory_space<vmem>>, vector<32x32xf32>
    tpu.vector_store %arg13[%c0_30, %c0_31], %42 {strides = array<i32>} : memref<32x32xf32, #tpu.memory_space<vmem>>, vector<32x32xf32>,
    return
  }
  func.func @transform_0(%arg0: i32) -> (i32, i32) {
    %c0_i32 = arith.constant 0 : i32
    %c0_i32_0 = arith.constant 0 : i32
    return %arg0, %c0_i32 : i32, i32
  }
  func.func @transform_1(%arg0: i32) -> (i32, i32) {
    %c0_i32 = arith.constant 0 : i32
    %c0_i32_0 = arith.constant 0 : i32
    return %arg0, %c0_i32 : i32, i32
  }
  func.func @transform_2(%arg0: i32) -> (i32, i32) {
    %c0_i32 = arith.constant 0 : i32
    %c0_i32_0 = arith.constant 0 : i32
    return %arg0, %c0_i32 : i32, i32
  }
  func.func @transform_3(%arg0: i32) -> (i32, i32) {
    %c0_i32 = arith.constant 0 : i32
    %c0_i32_0 = arith.constant 0 : i32
    %c0_i32_1 = arith.constant 0 : i32
    return %c0_i32, %c0_i32_0 : i32, i32
  }
  func.func @transform_4(%arg0: i32) -> (i32, i32) {
    %c0_i32 = arith.constant 0 : i32
    %c0_i32_0 = arith.constant 0 : i32
    %c0_i32_1 = arith.constant 0 : i32
    return %c0_i32, %c0_i32_0 : i32, i32
  }
  func.func @transform_5(%arg0: i32) -> (i32, i32) {
    %c0_i32 = arith.constant 0 : i32
    %c0_i32_0 = arith.constant 0 : i32
    %c0_i32_1 = arith.constant 0 : i32
    return %c0_i32, %c0_i32_0 : i32, i32
  }
  func.func @transform_6(%arg0: i32) -> (i32, i32) {
    %c0_i32 = arith.constant 0 : i32
    %c0_i32_0 = arith.constant 0 : i32
    %c0_i32_1 = arith.constant 0 : i32
    return %c0_i32, %c0_i32_0 : i32, i32
  }
  func.func @transform_7(%arg0: i32) -> (i32, i32) {
    %c0_i32 = arith.constant 0 : i32
    %c0_i32_0 = arith.constant 0 : i32
    %c0_i32_1 = arith.constant 0 : i32
    return %c0_i32, %c0_i32_0 : i32, i32
  }
  func.func @transform_8(%arg0: i32) -> (i32, i32) {
    %c0_i32 = arith.constant 0 : i32
    %c0_i32_0 = arith.constant 0 : i32
    %c0_i32_1 = arith.constant 0 : i32
    return %c0_i32, %c0_i32_0 : i32, i32
  }
  func.func @transform_9(%arg0: i32) -> (i32, i32) {
    %c0_i32 = arith.constant 0 : i32
    %c0_i32_0 = arith.constant 0 : i32
    %c0_i32_1 = arith.constant 0 : i32
    return %c0_i32, %c0_i32_0 : i32, i32
  }
  func.func @transform_10(%arg0: i32) -> (i32, i32) {
    %c0_i32 = arith.constant 0 : i32
    %c0_i32_0 = arith.constant 0 : i32
    %c0_i32_1 = arith.constant 0 : i32
    return %c0_i32, %c0_i32_0 : i32, i32
  }
  func.func @transform_11(%arg0: i32) -> (i32, i32) {
    %c0_i32 = arith.constant 0 : i32
    %c0_i32_0 = arith.constant 0 : i32
    %c0_i32_1 = arith.constant 0 : i32
    return %c0_i32, %c0_i32_0 : i32, i32
  }
  func.func @transform_12(%arg0: i32) -> (i32, i32) {
    %c0_i32 = arith.constant 0 : i32
    %c0_i32_0 = arith.constant 0 : i32
    return %arg0, %c0_i32 : i32, i32
  }
}

</mosaic_0001>

<llo_original>
// kernel: cvae_forward.1
$region0: #{cvae_forward.1}
  #allocation0 [shape = 'u32[]', space=smem, size = 0x4, offset = 0x4, fixed_abs, tag = 'smem constant byte address 0x4 - core index']
  #allocation1 [shape = 'u32[144,128]{1,0:T(1,128)}', space=vmem, size = 0x12000, scoped, tag = 'internal scratch']
  %s0 = inlined_call_operand.vmem [shape: f32[64,16], index: 0, kind: input, shape index: {}]
  %s1 = inlined_call_operand.vmem [shape: f32[64,8], index: 1, kind: input, shape index: {}]
  %s2 = inlined_call_operand.vmem [shape: f32[64,8], index: 2, kind: input, shape index: {}]
  %s3 = inlined_call_operand.vmem [shape: bf16[16,512], index: 3, kind: input, shape index: {}]
  %s4 = inlined_call_operand.vmem [shape: f32[1,512], index: 4, kind: input, shape index: {}]
  %s5 = inlined_call_operand.vmem [shape: bf16[512,16], index: 5, kind: input, shape index: {}]
  %s6 = inlined_call_operand.vmem [shape: f32[1,16], index: 6, kind: input, shape index: {}]
  %s7 = inlined_call_operand.vmem [shape: bf16[8,512], index: 7, kind: input, shape index: {}]
  %s8 = inlined_call_operand.vmem [shape: bf16[8,512], index: 8, kind: input, shape index: {}]
  %s9 = inlined_call_operand.vmem [shape: f32[1,512], index: 9, kind: input, shape index: {}]
  %s10 = inlined_call_operand.vmem [shape: bf16[512,16], index: 10, kind: input, shape index: {}]
  %s11 = inlined_call_operand.vmem [shape: f32[1,16], index: 11, kind: input, shape index: {}]
  %s12 = inlined_call_operand.vmem [shape: f32[64,32], index: 12, kind: output, shape index: {}]
  %s13 = sld [smem:[#allocation0]]
  $region81: #{cvae_forward.1} parent=0
    _
  %s15 = ssub.s32 1, %s13
  %s16 = scalar_select 0, %s15, %s13
  loop: start=0, step=1, limit=4
  $region2: #{cvae_forward.1} parent=0 // loop_pre_header
    _
  $region3: #{cvae_forward.1} parent=0 // loop_header
    %s18 = sphi 0, %s22
    %p19 = scmp.ge.s32.totalorder %s18, 4
    %s28 = sphi 0, %s30
    %s31 = sphi 0, %s28
    %s32 = sphi 0, %s31
    %s48 = sphi 0, %s32
    %s54 = sphi 0, %s56
    %s57 = sphi 0, %s54
    %s58 = sphi 0, %s57
    %s74 = sphi 0, %s58
    %s80 = sphi 0, %s82
    %s83 = sphi 0, %s80
    %s84 = sphi 0, %s83
    %s100 = sphi 0, %s84
    %s104 = sphi 0, %s104
    %s106 = sphi 0, %s104
    %s107 = sphi 0, %s106
    %s121 = sphi 0, %s107
    %s125 = sphi 0, %s125
    %s127 = sphi 0, %s125
    %s128 = sphi 0, %s127
    %s142 = sphi 0, %s128
    %s146 = sphi 0, %s146
    %s148 = sphi 0, %s146
    %s149 = sphi 0, %s148
    %s163 = sphi 0, %s149
    %s167 = sphi 0, %s167
    %s169 = sphi 0, %s167
    %s170 = sphi 0, %s169
    %s184 = sphi 0, %s170
    %s188 = sphi 0, %s188
    %s190 = sphi 0, %s188
    %s191 = sphi 0, %s190
    %s205 = sphi 0, %s191
    %s209 = sphi 0, %s209
    %s211 = sphi 0, %s209
    %s212 = sphi 0, %s211
    %s226 = sphi 0, %s212
    %s230 = sphi 0, %s230
    %s232 = sphi 0, %s230
    %s233 = sphi 0, %s232
    %s247 = sphi 0, %s233
    %s251 = sphi 0, %s251
    %s253 = sphi 0, %s251
    %s254 = sphi 0, %s253
    %s268 = sphi 0, %s254
    %s272 = sphi 0, %s272
    %s274 = sphi 0, %s272
    %s275 = sphi 0, %s274
    %s289 = sphi 0, %s275
    %s295 = sphi 0, %s297
    %s298 = sphi 0, %s295
    %s299 = sphi 0, %s298
    %s315 = sphi 0, %s299
  $region4: #{cvae_forward.1} parent=0 // loop_header_branch
    %21 = sbr.rel (%p19) target = $region8
  $region5: #{cvae_forward.1} parent=0 // loop_body
    %s23 = ssub.s32 %s18, 1
    %s24 = ssub.s32 %s18, 2
    %s25 = sadd.s32 %s18, 1
    %s26 = ssub.s32 %s18, %s25
    %p27 = scmp.eq.s32.totalorder %s26, 0
    %s29 = sadd.s32 %s28, 1
    %s30 = scalar_select %p27, %s28, %s29
    %p33 = pneg %p27
    %p34 = scmp.eq.s32.totalorder %s18, 1
    %p35 = por %p33, %p34
    %p36 = scmp.ne.s32.totalorder %s28, %s31
    %p37 = scmp.eq.s32.totalorder %s18, 0
    %p38 = por %p36, %p37
    %p39 = scmp.ne.s32.totalorder %s28, %s31
    %p40 = scmp.eq.s32.totalorder %s23, 1
    %p41 = por %p39, %p40
    %p42 = scmp.ne.s32.totalorder %s31, %s32
    %p43 = scmp.eq.s32.totalorder %s23, 0
    %p44 = por %p42, %p43
    %p45 = scmp.ne.s32.totalorder %s31, %s32
    %p46 = scmp.eq.s32.totalorder %s24, 1
    %p47 = por %p45, %p46
    %p49 = scmp.ne.s32.totalorder %s32, %s48
    %p50 = scmp.eq.s32.totalorder %s24, 0
    %p51 = por %p49, %p50
    %s52 = ssub.s32 %s18, %s25
    %p53 = scmp.eq.s32.totalorder %s52, 0
    %s55 = sadd.s32 %s54, 1
    %s56 = scalar_select %p53, %s54, %s55
    %p59 = pneg %p53
    %p60 = scmp.eq.s32.totalorder %s18, 1
    %p61 = por %p59, %p60
    %p62 = scmp.ne.s32.totalorder %s54, %s57
    %p63 = scmp.eq.s32.totalorder %s18, 0
    %p64 = por %p62, %p63
    %p65 = scmp.ne.s32.totalorder %s54, %s57
    %p66 = scmp.eq.s32.totalorder %s23, 1
    %p67 = por %p65, %p66
    %p68 = scmp.ne.s32.totalorder %s57, %s58
    %p69 = scmp.eq.s32.totalorder %s23, 0
    %p70 = por %p68, %p69
    %p71 = scmp.ne.s32.totalorder %s57, %s58
    %p72 = scmp.eq.s32.totalorder %s24, 1
    %p73 = por %p71, %p72
    %p75 = scmp.ne.s32.totalorder %s58, %s74
    %p76 = scmp.eq.s32.totalorder %s24, 0
    %p77 = por %p75, %p76
    %s78 = ssub.s32 %s18, %s25
    %p79 = scmp.eq.s32.totalorder %s78, 0
    %s81 = sadd.s32 %s80, 1
    %s82 = scalar_select %p79, %s80, %s81
    %p85 = pneg %p79
    %p86 = scmp.eq.s32.totalorder %s18, 1
    %p87 = por %p85, %p86
    %p88 = scmp.ne.s32.totalorder %s80, %s83
    %p89 = scmp.eq.s32.totalorder %s18, 0
    %p90 = por %p88, %p89
    %p91 = scmp.ne.s32.totalorder %s80, %s83
    %p92 = scmp.eq.s32.totalorder %s23, 1
    %p93 = por %p91, %p92
    %p94 = scmp.ne.s32.totalorder %s83, %s84
    %p95 = scmp.eq.s32.totalorder %s23, 0
    %p96 = por %p94, %p95
    %p97 = scmp.ne.s32.totalorder %s83, %s84
    %p98 = scmp.eq.s32.totalorder %s24, 1
    %p99 = por %p97, %p98
    %p101 = scmp.ne.s32.totalorder %s84, %s100
    %p102 = scmp.eq.s32.totalorder %s24, 0
    %p103 = por %p101, %p102
    %s105 = sadd.s32 %s104, 1
    %p108 = scmp.eq.s32.totalorder %s18, 1
    %p109 = scmp.ne.s32.totalorder %s104, %s106
    %p110 = scmp.eq.s32.totalorder %s18, 0
    %p111 = por %p109, %p110
    %p112 = scmp.ne.s32.totalorder %s104, %s106
    %p113 = scmp.eq.s32.totalorder %s23, 1
    %p114 = por %p112, %p113
    %p115 = scmp.ne.s32.totalorder %s106, %s107
    %p116 = scmp.eq.s32.totalorder %s23, 0
    %p117 = por %p115, %p116
    %p118 = scmp.ne.s32.totalorder %s106, %s107
    %p119 = scmp.eq.s32.totalorder %s24, 1
    %p120 = por %p118, %p119
    %p122 = scmp.ne.s32.totalorder %s107, %s121
    %p123 = scmp.eq.s32.totalorder %s24, 0
    %p124 = por %p122, %p123
    %s126 = sadd.s32 %s125, 1
    %p129 = scmp.eq.s32.totalorder %s18, 1
    %p130 = scmp.ne.s32.totalorder %s125, %s127
    %p131 = scmp.eq.s32.totalorder %s18, 0
    %p132 = por %p130, %p131
    %p133 = scmp.ne.s32.totalorder %s125, %s127
    %p134 = scmp.eq.s32.totalorder %s23, 1
    %p135 = por %p133, %p134
    %p136 = scmp.ne.s32.totalorder %s127, %s128
    %p137 = scmp.eq.s32.totalorder %s23, 0
    %p138 = por %p136, %p137
    %p139 = scmp.ne.s32.totalorder %s127, %s128
    %p140 = scmp.eq.s32.totalorder %s24, 1
    %p141 = por %p139, %p140
    %p143 = scmp.ne.s32.totalorder %s128, %s142
    %p144 = scmp.eq.s32.totalorder %s24, 0
    %p145 = por %p143, %p144
    %s147 = sadd.s32 %s146, 1
    %p150 = scmp.eq.s32.totalorder %s18, 1
    %p151 = scmp.ne.s32.totalorder %s146, %s148
    %p152 = scmp.eq.s32.totalorder %s18, 0
    %p153 = por %p151, %p152
    %p154 = scmp.ne.s32.totalorder %s146, %s148
    %p155 = scmp.eq.s32.totalorder %s23, 1
    %p156 = por %p154, %p155
    %p157 = scmp.ne.s32.totalorder %s148, %s149
    %p158 = scmp.eq.s32.totalorder %s23, 0
    %p159 = por %p157, %p158
    %p160 = scmp.ne.s32.totalorder %s148, %s149
    %p161 = scmp.eq.s32.totalorder %s24, 1
    %p162 = por %p160, %p161
    %p164 = scmp.ne.s32.totalorder %s149, %s163
    %p165 = scmp.eq.s32.totalorder %s24, 0
    %p166 = por %p164, %p165
    %s168 = sadd.s32 %s167, 1
    %p171 = scmp.eq.s32.totalorder %s18, 1
    %p172 = scmp.ne.s32.totalorder %s167, %s169
    %p173 = scmp.eq.s32.totalorder %s18, 0
    %p174 = por %p172, %p173
    %p175 = scmp.ne.s32.totalorder %s167, %s169
    %p176 = scmp.eq.s32.totalorder %s23, 1
    %p177 = por %p175, %p176
    %p178 = scmp.ne.s32.totalorder %s169, %s170
    %p179 = scmp.eq.s32.totalorder %s23, 0
    %p180 = por %p178, %p179
    %p181 = scmp.ne.s32.totalorder %s169, %s170
    %p182 = scmp.eq.s32.totalorder %s24, 1
    %p183 = por %p181, %p182
    %p185 = scmp.ne.s32.totalorder %s170, %s184
    %p186 = scmp.eq.s32.totalorder %s24, 0
    %p187 = por %p185, %p186
    %s189 = sadd.s32 %s188, 1
    %p192 = scmp.eq.s32.totalorder %s18, 1
    %p193 = scmp.ne.s32.totalorder %s188, %s190
    %p194 = scmp.eq.s32.totalorder %s18, 0
    %p195 = por %p193, %p194
    %p196 = scmp.ne.s32.totalorder %s188, %s190
    %p197 = scmp.eq.s32.totalorder %s23, 1
    %p198 = por %p196, %p197
    %p199 = scmp.ne.s32.totalorder %s190, %s191
    %p200 = scmp.eq.s32.totalorder %s23, 0
    %p201 = por %p199, %p200
    %p202 = scmp.ne.s32.totalorder %s190, %s191
    %p203 = scmp.eq.s32.totalorder %s24, 1
    %p204 = por %p202, %p203
    %p206 = scmp.ne.s32.totalorder %s191, %s205
    %p207 = scmp.eq.s32.totalorder %s24, 0
    %p208 = por %p206, %p207
    %s210 = sadd.s32 %s209, 1
    %p213 = scmp.eq.s32.totalorder %s18, 1
    %p214 = scmp.ne.s32.totalorder %s209, %s211
    %p215 = scmp.eq.s32.totalorder %s18, 0
    %p216 = por %p214, %p215
    %p217 = scmp.ne.s32.totalorder %s209, %s211
    %p218 = scmp.eq.s32.totalorder %s23, 1
    %p219 = por %p217, %p218
    %p220 = scmp.ne.s32.totalorder %s211, %s212
    %p221 = scmp.eq.s32.totalorder %s23, 0
    %p222 = por %p220, %p221
    %p223 = scmp.ne.s32.totalorder %s211, %s212
    %p224 = scmp.eq.s32.totalorder %s24, 1
    %p225 = por %p223, %p224
    %p227 = scmp.ne.s32.totalorder %s212, %s226
    %p228 = scmp.eq.s32.totalorder %s24, 0
    %p229 = por %p227, %p228
    %s231 = sadd.s32 %s230, 1
    %p234 = scmp.eq.s32.totalorder %s18, 1
    %p235 = scmp.ne.s32.totalorder %s230, %s232
    %p236 = scmp.eq.s32.totalorder %s18, 0
    %p237 = por %p235, %p236
    %p238 = scmp.ne.s32.totalorder %s230, %s232
    %p239 = scmp.eq.s32.totalorder %s23, 1
    %p240 = por %p238, %p239
    %p241 = scmp.ne.s32.totalorder %s232, %s233
    %p242 = scmp.eq.s32.totalorder %s23, 0
    %p243 = por %p241, %p242
    %p244 = scmp.ne.s32.totalorder %s232, %s233
    %p245 = scmp.eq.s32.totalorder %s24, 1
    %p246 = por %p244, %p245
    %p248 = scmp.ne.s32.totalorder %s233, %s247
    %p249 = scmp.eq.s32.totalorder %s24, 0
    %p250 = por %p248, %p249
    %s252 = sadd.s32 %s251, 1
    %p255 = scmp.eq.s32.totalorder %s18, 1
    %p256 = scmp.ne.s32.totalorder %s251, %s253
    %p257 = scmp.eq.s32.totalorder %s18, 0
    %p258 = por %p256, %p257
    %p259 = scmp.ne.s32.totalorder %s251, %s253
    %p260 = scmp.eq.s32.totalorder %s23, 1
    %p261 = por %p259, %p260
    %p262 = scmp.ne.s32.totalorder %s253, %s254
    %p263 = scmp.eq.s32.totalorder %s23, 0
    %p264 = por %p262, %p263
    %p265 = scmp.ne.s32.totalorder %s253, %s254
    %p266 = scmp.eq.s32.totalorder %s24, 1
    %p267 = por %p265, %p266
    %p269 = scmp.ne.s32.totalorder %s254, %s268
    %p270 = scmp.eq.s32.totalorder %s24, 0
    %p271 = por %p269, %p270
    %s273 = sadd.s32 %s272, 1
    %p276 = scmp.eq.s32.totalorder %s18, 1
    %p277 = scmp.ne.s32.totalorder %s272, %s274
    %p278 = scmp.eq.s32.totalorder %s18, 0
    %p279 = por %p277, %p278
    %p280 = scmp.ne.s32.totalorder %s272, %s274
    %p281 = scmp.eq.s32.totalorder %s23, 1
    %p282 = por %p280, %p281
    %p283 = scmp.ne.s32.totalorder %s274, %s275
    %p284 = scmp.eq.s32.totalorder %s23, 0
    %p285 = por %p283, %p284
    %p286 = scmp.ne.s32.totalorder %s274, %s275
    %p287 = scmp.eq.s32.totalorder %s24, 1
    %p288 = por %p286, %p287
    %p290 = scmp.ne.s32.totalorder %s275, %s289
    %p291 = scmp.eq.s32.totalorder %s24, 0
    %p292 = por %p290, %p291
    %s293 = ssub.s32 %s18, %s25
    %p294 = scmp.eq.s32.totalorder %s293, 0
    %s296 = sadd.s32 %s295, 1
    %s297 = scalar_select %p294, %s295, %s296
    %p300 = pneg %p294
    %p301 = scmp.eq.s32.totalorder %s18, 1
    %p302 = por %p300, %p301
    %p303 = scmp.ne.s32.totalorder %s295, %s298
    %p304 = scmp.eq.s32.totalorder %s18, 0
    %p305 = por %p303, %p304
    %p306 = scmp.ne.s32.totalorder %s295, %s298
    %p307 = scmp.eq.s32.totalorder %s23, 1
    %p308 = por %p306, %p307
    %p309 = scmp.ne.s32.totalorder %s298, %s299
    %p310 = scmp.eq.s32.totalorder %s23, 0
    %p311 = por %p309, %p310
    %p312 = scmp.ne.s32.totalorder %s298, %s299
    %p313 = scmp.eq.s32.totalorder %s24, 1
    %p314 = por %p312, %p313
    %p316 = scmp.ne.s32.totalorder %s299, %s315
    %p317 = scmp.eq.s32.totalorder %s24, 0
    %p318 = por %p316, %p317
    %p319 = scmp.le.s32.totalorder 1, %s18
    %p320 = scmp.lt.s32.totalorder %s18, 3
    %p321 = pnand %p319, %p320
    %p322 = pneg %p321
    // Predicated region
    $region9: #{cvae_forward.1} parent=5 // pred_check
      _
    $region10: #{cvae_forward.1} parent=5 // pred_check_branch
      %324 = sbr.rel (%p321) target = $region12
    $region11: #{cvae_forward.1} parent=5 // pred_region
      %s325 = ssub.s32 %s18, 1
      // Predicated region
      $region13: #{cvae_forward.1} parent=11 // pred_check
        %p326 = pneg %p117
      $region14: #{cvae_forward.1} parent=11 // pred_check_branch
        %328 = sbr.rel (%p326) target = $region16
      $region15: #{cvae_forward.1} parent=11 // pred_region
        _
      $region16: #{cvae_forward.1} parent=11 // pred_fallthru
        _
      // Predicated region
      $region17: #{cvae_forward.1} parent=11 // pred_check
        %p329 = pneg %p138
      $region18: #{cvae_forward.1} parent=11 // pred_check_branch
        %331 = sbr.rel (%p329) target = $region20
      $region19: #{cvae_forward.1} parent=11 // pred_region
        _
      $region20: #{cvae_forward.1} parent=11 // pred_fallthru
        _
      // Predicated region
      $region21: #{cvae_forward.1} parent=11 // pred_check
        %p332 = pneg %p159
      $region22: #{cvae_forward.1} parent=11 // pred_check_branch
        %334 = sbr.rel (%p332) target = $region24
      $region23: #{cvae_forward.1} parent=11 // pred_region
        _
      $region24: #{cvae_forward.1} parent=11 // pred_fallthru
        _
      // Predicated region
      $region25: #{cvae_forward.1} parent=11 // pred_check
        %p335 = pneg %p180
      $region26: #{cvae_forward.1} parent=11 // pred_check_branch
        %337 = sbr.rel (%p335) target = $region28
      $region27: #{cvae_forward.1} parent=11 // pred_region
        _
      $region28: #{cvae_forward.1} parent=11 // pred_fallthru
        _
      // Predicated region
      $region29: #{cvae_forward.1} parent=11 // pred_check
        %p338 = pneg %p201
      $region30: #{cvae_forward.1} parent=11 // pred_check_branch
        %340 = sbr.rel (%p338) target = $region32
      $region31: #{cvae_forward.1} parent=11 // pred_region
        _
      $region32: #{cvae_forward.1} parent=11 // pred_fallthru
        _
      // Predicated region
      $region33: #{cvae_forward.1} parent=11 // pred_check
        %p341 = pneg %p222
      $region34: #{cvae_forward.1} parent=11 // pred_check_branch
        %343 = sbr.rel (%p341) target = $region36
      $region35: #{cvae_forward.1} parent=11 // pred_region
        _
      $region36: #{cvae_forward.1} parent=11 // pred_fallthru
        _
      // Predicated region
      $region37: #{cvae_forward.1} parent=11 // pred_check
        %p344 = pneg %p243
      $region38: #{cvae_forward.1} parent=11 // pred_check_branch
        %346 = sbr.rel (%p344) target = $region40
      $region39: #{cvae_forward.1} parent=11 // pred_region
        _
      $region40: #{cvae_forward.1} parent=11 // pred_fallthru
        _
      // Predicated region
      $region41: #{cvae_forward.1} parent=11 // pred_check
        %p347 = pneg %p264
      $region42: #{cvae_forward.1} parent=11 // pred_check_branch
        %349 = sbr.rel (%p347) target = $region44
      $region43: #{cvae_forward.1} parent=11 // pred_region
        _
      $region44: #{cvae_forward.1} parent=11 // pred_fallthru
        _
      // Predicated region
      $region45: #{cvae_forward.1} parent=11 // pred_check
        %p350 = pneg %p285
      $region46: #{cvae_forward.1} parent=11 // pred_check_branch
        %352 = sbr.rel (%p350) target = $region48
      $region47: #{cvae_forward.1} parent=11 // pred_region
        _
      $region48: #{cvae_forward.1} parent=11 // pred_fallthru
        _
    $region12: #{cvae_forward.1} parent=5 // pred_fallthru
      _
    %p353 = scmp.lt.s32.totalorder %s18, 2
    // Predicated region
    $region49: #{cvae_forward.1} parent=5 // pred_check
      %p354 = pneg %p353
    $region50: #{cvae_forward.1} parent=5 // pred_check_branch
      %356 = sbr.rel (%p354) target = $region52
    $region51: #{cvae_forward.1} parent=5 // pred_region
      // Predicated region
      $region53: #{cvae_forward.1} parent=51 // pred_check
        %p357 = pneg %p38
      $region54: #{cvae_forward.1} parent=51 // pred_check_branch
        %359 = sbr.rel (%p357) target = $region56
      $region55: #{cvae_forward.1} parent=51 // pred_region
        %s360 = smul.u32 4, %s18
        %p361 = scmp.lt.s32.totalorder %s360, 7
        %s362 = scalar_select %p361, %s360, 7
        %s363 = smul.addr %s362, 8
        %s364 = scalar_lea.vmem %s0, %s363
        %s365 = smul.u32 4, %s18
      $region56: #{cvae_forward.1} parent=51 // pred_fallthru
        _
      // Predicated region
      $region57: #{cvae_forward.1} parent=51 // pred_check
        %p366 = pneg %p64
      $region58: #{cvae_forward.1} parent=51 // pred_check_branch
        %368 = sbr.rel (%p366) target = $region60
      $region59: #{cvae_forward.1} parent=51 // pred_region
        %s369 = smul.u32 4, %s18
        %p370 = scmp.lt.s32.totalorder %s369, 7
        %s371 = scalar_select %p370, %s369, 7
        %s372 = smul.addr %s371, 8
        %s373 = scalar_lea.vmem %s1, %s372
        %s374 = smul.u32 4, %s18
      $region60: #{cvae_forward.1} parent=51 // pred_fallthru
        _
      // Predicated region
      $region61: #{cvae_forward.1} parent=51 // pred_check
        %p375 = pneg %p90
      $region62: #{cvae_forward.1} parent=51 // pred_check_branch
        %377 = sbr.rel (%p375) target = $region64
      $region63: #{cvae_forward.1} parent=51 // pred_region
        %s378 = smul.u32 4, %s18
        %p379 = scmp.lt.s32.totalorder %s378, 7
        %s380 = scalar_select %p379, %s378, 7
        %s381 = smul.addr %s380, 8
        %s382 = scalar_lea.vmem %s2, %s381
        %s383 = smul.u32 4, %s18
      $region64: #{cvae_forward.1} parent=51 // pred_fallthru
        _
    $region52: #{cvae_forward.1} parent=5 // pred_fallthru
      _
    %p384 = scmp.le.s32.totalorder 1, %s18
    %p385 = scmp.lt.s32.totalorder %s18, 3
    %p386 = pnand %p384, %p385
    %p387 = pneg %p386
    // Predicated region
    $region65: #{cvae_forward.1} parent=5 // pred_check
      _
    $region66: #{cvae_forward.1} parent=5 // pred_check_branch
      %389 = sbr.rel (%p386) target = $region68
    $region67: #{cvae_forward.1} parent=5 // pred_region
      %s390 = ssub.s32 %s18, 1
      %s391 = smul.u32 4, %s23
      %p392 = scmp.lt.s32.totalorder %s391, 7
      %s393 = scalar_select %p392, %s391, 7
      %s394 = smul.addr %s393, 8
      %s395 = scalar_lea.vmem %s0, %s394
      %p396 = pneg %p44
      %p397 = pneg %p41
      %s398 = smul.u32 4, %s23
      %p399 = scmp.lt.s32.totalorder %s398, 7
      %s400 = scalar_select %p399, %s398, 7
      %s401 = smul.addr %s400, 8
      %s402 = scalar_lea.vmem %s1, %s401
      %p403 = pneg %p70
      %p404 = pneg %p67
      %s405 = smul.u32 4, %s23
      %p406 = scmp.lt.s32.totalorder %s405, 7
      %s407 = scalar_select %p406, %s405, 7
      %s408 = smul.addr %s407, 8
      %s409 = scalar_lea.vmem %s2, %s408
      %p410 = pneg %p96
      %p411 = pneg %p93
      %p412 = pneg %p117
      %p413 = pneg %p114
      %p414 = pneg %p138
      %p415 = pneg %p135
      %p416 = pneg %p159
      %p417 = pneg %p156
      %p418 = pneg %p180
      %p419 = pneg %p177
      %p420 = pneg %p201
      %p421 = pneg %p198
      %p422 = pneg %p222
      %p423 = pneg %p219
      %p424 = pneg %p243
      %p425 = pneg %p240
      %p426 = pneg %p264
      %p427 = pneg %p261
      %p428 = pneg %p285
      %p429 = pneg %p282
      %p430 = pneg %p311
      %p431 = pneg %p308
      %s432 = smul.u32 4, %s23
      %p433 = scmp.lt.s32.totalorder %s432, 7
      %s434 = scalar_select %p433, %s432, 7
      %s435 = smul.addr %s434, 8
      %s436 = scalar_lea.vmem %s12, %s435
      %s437 = smul.u32 4, %s23
      %p438 = scmp.lt.s32.totalorder %s437, 7
      %s439 = scalar_select %p438, %s437, 7
      %s440 = smul.addr %s439, 8
      %s441 = scalar_lea.vmem %s0, %s440
      %s442 = smul.u32 4, %s23
      %s443 = smul.u32 4, %s23
      %p444 = scmp.lt.s32.totalorder %s443, 7
      %s445 = scalar_select %p444, %s443, 7
      %s446 = smul.addr %s445, 8
      %s447 = scalar_lea.vmem %s1, %s446
      %s448 = smul.u32 4, %s23
      %s449 = smul.u32 4, %s23
      %p450 = scmp.lt.s32.totalorder %s449, 7
      %s451 = scalar_select %p450, %s449, 7
      %s452 = smul.addr %s451, 8
      %s453 = scalar_lea.vmem %s2, %s452
      %s454 = smul.u32 4, %s23
      %s455 = smul.u32 4, %s23
      %p456 = scmp.lt.s32.totalorder %s455, 7
      %s457 = scalar_select %p456, %s455, 7
      %s458 = smul.addr %s457, 8
      %s459 = scalar_lea.vmem %s12, %s458
      %s460 = smul.u32 4, %s23
      %v462 = vld [vmem:[%s441] sm:$0xff]
      %v463 = vld [vmem:[%s441 + $0x8] sm:$0xff]
      %v464 = vld [vmem:[%s441 + $0x10] sm:$0xff]
      %v465 = vld [vmem:[%s441 + $0x18] sm:$0xff]
      %v466 = vpack.c.bf16 %v463, %v462
      %v467 = vpack.c.bf16 %v465, %v464
      %v468 = vld [vmem:[%s447] sm:$0xff]
      %v469 = vld [vmem:[%s447 + $0x8] sm:$0xff]
      %v470 = vld [vmem:[%s447 + $0x10] sm:$0xff]
      %v471 = vld [vmem:[%s447 + $0x18] sm:$0xff]
      %v472 = vpack.c.bf16 %v469, %v468
      %v473 = vpack.c.bf16 %v471, %v470
      %v474 = vld [vmem:[%s453] sm:$0xff]
      %v475 = vld [vmem:[%s453 + $0x8] sm:$0xff]
      %v476 = vld [vmem:[%s453 + $0x10] sm:$0xff]
      %v477 = vld [vmem:[%s453 + $0x18] sm:$0xff]
      %v478 = vld [vmem:[%s3] sm:$0xff]
      %v479 = vld [vmem:[%s3 + $0x8] sm:$0xff]
      %v480 = vld [vmem:[%s3 + $0x10] sm:$0xff]
      %v481 = vld [vmem:[%s3 + $0x18] sm:$0xff]
      %v482 = vld [vmem:[%s4] sm:$0xf]
      %v484 = vlaneseq
      %v485 = vshrl.u32 %v484, 7
      %v486 = vsub.s32 0, %v485
      %v487 = vrot.slane %v482, %v486
      %v488 = vlaneseq
      %v489 = vshrl.u32 %v488, 7
      %v490 = vsub.s32 1, %v489
      %v491 = vrot.slane %v482, %v490
      %v492 = vlaneseq
      %v493 = vshrl.u32 %v492, 7
      %v494 = vsub.s32 2, %v493
      %v495 = vrot.slane %v482, %v494
      %v496 = vlaneseq
      %v497 = vshrl.u32 %v496, 7
      %v498 = vsub.s32 3, %v497
      %v499 = vrot.slane %v482, %v498
      %v508 = vunpack.c.l.b16 %v478
      %v509 = vunpack.c.h.b16 %v478
      %v510 = vunpack.c.l.b16 %v479
      %v511 = vunpack.c.h.b16 %v479
      %v512 = vunpack.c.l.b16 %v480
      %v513 = vunpack.c.h.b16 %v480
      %v514 = vunpack.c.l.b16 %v481
      %v515 = vunpack.c.h.b16 %v481
      %v516 = vpack.c.b16 %v512, %v508
      %v517 = vpack.c.b16 %v513, %v509
      %v518 = vpack.c.b16 %v514, %v510
      %v519 = vpack.c.b16 %v515, %v511
      %vm524 = vcmask 130048
      %v526 = vsel %vm524, %v466, 0
      %v529 = vsel %vm524, %v467, 0
      %531 = vmatprep.subr.bf16.mxu0 0
      %532 = vmatpush1.bf16.msra.mxu0 0
      %533 = vmatprep.subr.bf16.mxu0 0
      %534 = vmatpush1.bf16.msra.mxu0 0
      %535 = vmatprep.subr.bf16.mxu0 0
      %536 = vmatpush1.bf16.msra.mxu0 0
      %537 = vmatprep.subr.bf16.mxu0 0
      %538 = vmatpush1.bf16.msra.mxu0 0
      %539 = vmatprep.subr.bf16.mxu0 0
      %540 = vmatpush1.bf16.msra.mxu0 0
      %541 = vmatprep.subr.bf16.mxu0 0
      %542 = vmatpush1.bf16.msra.mxu0 0
      %543 = vmatprep.subr.bf16.mxu0 0
      %544 = vmatpush1.bf16.msra.mxu0 0
      %545 = vmatprep.subr.bf16.mxu0 %v517
      %546 = vmatpush1.bf16.msra.mxu0 %v516
      %547 = vmatprep.subr.bf16.mxu0 0
      %548 = vmatpush2.bf16.msra.mxu0 0
      %549 = vmatprep.subr.bf16.mxu0 0
      %550 = vmatpush2.bf16.msra.mxu0 0
      %551 = vmatprep.subr.bf16.mxu0 0
      %552 = vmatpush2.bf16.msra.mxu0 0
      %553 = vmatprep.subr.bf16.mxu0 0
      %554 = vmatpush2.bf16.msra.mxu0 0
      %555 = vmatprep.subr.bf16.mxu0 0
      %556 = vmatpush2.bf16.msra.mxu0 0
      %557 = vmatprep.subr.bf16.mxu0 0
      %558 = vmatpush2.bf16.msra.mxu0 0
      %559 = vmatprep.subr.bf16.mxu0 0
      %560 = vmatpush2.bf16.msra.mxu0 0
      %561 = vmatprep.subr.bf16.mxu0 0
      %562 = vmatpush2.bf16.msra.mxu0 0
      %563 = vmatprep.mubr.bf16.mxu0 0
      %564 = vmatmul.mubr.bf16.gmra.mxu0 %v526
      %v565 = vpop.f32.mrf.mxu0
      %v566 = vadd.f32 %v487, %v565
      %v567 = vpop.f32.mrf.mxu0
      %v568 = vadd.f32 %v491, %v567
      %v569 = vpop.f32.mrf.mxu0
      %v570 = vadd.f32 %v487, %v569
      %v571 = vpop.f32.mrf.mxu0
      %v572 = vadd.f32 %v491, %v571
      %573 = vmatprep.mubr.bf16.mxu0 0
      %574 = vmatmul.mubr.bf16.gmra.mxu0 %v529
      %v575 = vpop.f32.mrf.mxu0
      %v576 = vadd.f32 %v487, %v575
      %v577 = vpop.f32.mrf.mxu0
      %v578 = vadd.f32 %v491, %v577
      %v579 = vpop.f32.mrf.mxu0
      %v580 = vadd.f32 %v487, %v579
      %v581 = vpop.f32.mrf.mxu0
      %v582 = vadd.f32 %v491, %v581
      %583 = vdwg.mxu0
      %584 = vmatprep.subr.bf16.mxu0 0
      %585 = vmatpush1.bf16.msra.mxu0 0
      %586 = vmatprep.subr.bf16.mxu0 0
      %587 = vmatpush1.bf16.msra.mxu0 0
      %588 = vmatprep.subr.bf16.mxu0 0
      %589 = vmatpush1.bf16.msra.mxu0 0
      %590 = vmatprep.subr.bf16.mxu0 0
      %591 = vmatpush1.bf16.msra.mxu0 0
      %592 = vmatprep.subr.bf16.mxu0 0
      %593 = vmatpush1.bf16.msra.mxu0 0
      %594 = vmatprep.subr.bf16.mxu0 0
      %595 = vmatpush1.bf16.msra.mxu0 0
      %596 = vmatprep.subr.bf16.mxu0 0
      %597 = vmatpush1.bf16.msra.mxu0 0
      %598 = vmatprep.subr.bf16.mxu0 %v519
      %599 = vmatpush1.bf16.msra.mxu0 %v518
      %600 = vmatprep.subr.bf16.mxu0 0
      %601 = vmatpush2.bf16.msra.mxu0 0
      %602 = vmatprep.subr.bf16.mxu0 0
      %603 = vmatpush2.bf16.msra.mxu0 0
      %604 = vmatprep.subr.bf16.mxu0 0
      %605 = vmatpush2.bf16.msra.mxu0 0
      %606 = vmatprep.subr.bf16.mxu0 0
      %607 = vmatpush2.bf16.msra.mxu0 0
      %608 = vmatprep.subr.bf16.mxu0 0
      %609 = vmatpush2.bf16.msra.mxu0 0
      %610 = vmatprep.subr.bf16.mxu0 0
      %611 = vmatpush2.bf16.msra.mxu0 0
      %612 = vmatprep.subr.bf16.mxu0 0
      %613 = vmatpush2.bf16.msra.mxu0 0
      %614 = vmatprep.subr.bf16.mxu0 0
      %615 = vmatpush2.bf16.msra.mxu0 0
      %616 = vmatprep.mubr.bf16.mxu0 0
      %617 = vmatmul.mubr.bf16.gmra.mxu0 %v526
      %v618 = vpop.f32.mrf.mxu0
      %v619 = vadd.f32 %v495, %v618
      %v620 = vpop.f32.mrf.mxu0
      %v621 = vadd.f32 %v499, %v620
      %v622 = vpop.f32.mrf.mxu0
      %v623 = vadd.f32 %v495, %v622
      %v624 = vpop.f32.mrf.mxu0
      %v625 = vadd.f32 %v499, %v624
      %626 = vmatprep.mubr.bf16.mxu0 0
      %627 = vmatmul.mubr.bf16.gmra.mxu0 %v529
      %v628 = vpop.f32.mrf.mxu0
      %v629 = vadd.f32 %v495, %v628
      %v630 = vpop.f32.mrf.mxu0
      %v631 = vadd.f32 %v499, %v630
      %v632 = vpop.f32.mrf.mxu0
      %v633 = vadd.f32 %v495, %v632
      %v634 = vpop.f32.mrf.mxu0
      %v635 = vadd.f32 %v499, %v634
      %636 = vdwg.mxu0
      %v637 = vmax.f32 %v566, 0.0
      %v638 = vmax.f32 %v568, 0.0
      %v639 = vmax.f32 %v619, 0.0
      %v640 = vmax.f32 %v621, 0.0
      %v641 = vmax.f32 %v570, 0.0
      %v642 = vmax.f32 %v572, 0.0
      %v643 = vmax.f32 %v623, 0.0
      %v644 = vmax.f32 %v625, 0.0
      %v645 = vmax.f32 %v576, 0.0
      %v646 = vmax.f32 %v578, 0.0
      %v647 = vmax.f32 %v629, 0.0
      %v648 = vmax.f32 %v631, 0.0
      %v649 = vmax.f32 %v580, 0.0
      %v650 = vmax.f32 %v582, 0.0
      %v651 = vmax.f32 %v633, 0.0
      %v652 = vmax.f32 %v635, 0.0
      %v653 = vpack.c.bf16 %v641, %v637
      %v654 = vpack.c.bf16 %v642, %v638
      %v655 = vpack.c.bf16 %v643, %v639
      %v656 = vpack.c.bf16 %v644, %v640
      %v657 = vpack.c.bf16 %v649, %v645
      %v658 = vpack.c.bf16 %v650, %v646
      %v659 = vpack.c.bf16 %v651, %v647
      %v660 = vpack.c.bf16 %v652, %v648
      %v661 = vld [vmem:[%s5] sm:$0xf]
      %v662 = vld [vmem:[%s5 + $0x4] sm:$0xf]
      %v663 = vld [vmem:[%s5 + $0x8] sm:$0xf]
      %v664 = vld [vmem:[%s5 + $0xc] sm:$0xf]
      %v665 = vld [vmem:[%s5 + $0x10] sm:$0xf]
      %v666 = vld [vmem:[%s5 + $0x14] sm:$0xf]
      %v667 = vld [vmem:[%s5 + $0x18] sm:$0xf]
      %v668 = vld [vmem:[%s5 + $0x1c] sm:$0xf]
      %v669 = vld [vmem:[%s5 + $0x20] sm:$0xf]
      %v670 = vld [vmem:[%s5 + $0x24] sm:$0xf]
      %v671 = vld [vmem:[%s5 + $0x28] sm:$0xf]
      %v672 = vld [vmem:[%s5 + $0x2c] sm:$0xf]
      %v673 = vld [vmem:[%s5 + $0x30] sm:$0xf]
      %v674 = vld [vmem:[%s5 + $0x34] sm:$0xf]
      %v675 = vld [vmem:[%s5 + $0x38] sm:$0xf]
      %v676 = vld [vmem:[%s5 + $0x3c] sm:$0xf]
      %v677 = vld [vmem:[%s5 + $0x40] sm:$0xf]
      %v678 = vld [vmem:[%s5 + $0x44] sm:$0xf]
      %v679 = vld [vmem:[%s5 + $0x48] sm:$0xf]
      %v680 = vld [vmem:[%s5 + $0x4c] sm:$0xf]
      %v681 = vld [vmem:[%s5 + $0x50] sm:$0xf]
      %v682 = vld [vmem:[%s5 + $0x54] sm:$0xf]
      %v683 = vld [vmem:[%s5 + $0x58] sm:$0xf]
      %v684 = vld [vmem:[%s5 + $0x5c] sm:$0xf]
      %v685 = vld [vmem:[%s5 + $0x60] sm:$0xf]
      %v686 = vld [vmem:[%s5 + $0x64] sm:$0xf]
      %v687 = vld [vmem:[%s5 + $0x68] sm:$0xf]
      %v688 = vld [vmem:[%s5 + $0x6c] sm:$0xf]
      %v689 = vld [vmem:[%s5 + $0x70] sm:$0xf]
      %v690 = vld [vmem:[%s5 + $0x74] sm:$0xf]
      %v691 = vld [vmem:[%s5 + $0x78] sm:$0xf]
      %v692 = vld [vmem:[%s5 + $0x7c] sm:$0xf]
      %v693 = vld [vmem:[%s5 + $0x80] sm:$0xf]
      %v694 = vld [vmem:[%s5 + $0x84] sm:$0xf]
      %v695 = vld [vmem:[%s5 + $0x88] sm:$0xf]
      %v696 = vld [vmem:[%s5 + $0x8c] sm:$0xf]
      %v697 = vld [vmem:[%s5 + $0x90] sm:$0xf]
      %v698 = vld [vmem:[%s5 + $0x94] sm:$0xf]
      %v699 = vld [vmem:[%s5 + $0x98] sm:$0xf]
      %v700 = vld [vmem:[%s5 + $0x9c] sm:$0xf]
      %v701 = vld [vmem:[%s5 + $0xa0] sm:$0xf]
      %v702 = vld [vmem:[%s5 + $0xa4] sm:$0xf]
      %v703 = vld [vmem:[%s5 + $0xa8] sm:$0xf]
      %v704 = vld [vmem:[%s5 + $0xac] sm:$0xf]
      %v705 = vld [vmem:[%s5 + $0xb0] sm:$0xf]
      %v706 = vld [vmem:[%s5 + $0xb4] sm:$0xf]
      %v707 = vld [vmem:[%s5 + $0xb8] sm:$0xf]
      %v708 = vld [vmem:[%s5 + $0xbc] sm:$0xf]
      %v709 = vld [vmem:[%s5 + $0xc0] sm:$0xf]
      %v710 = vld [vmem:[%s5 + $0xc4] sm:$0xf]
      %v711 = vld [vmem:[%s5 + $0xc8] sm:$0xf]
      %v712 = vld [vmem:[%s5 + $0xcc] sm:$0xf]
      %v713 = vld [vmem:[%s5 + $0xd0] sm:$0xf]
      %v714 = vld [vmem:[%s5 + $0xd4] sm:$0xf]
      %v715 = vld [vmem:[%s5 + $0xd8] sm:$0xf]
      %v716 = vld [vmem:[%s5 + $0xdc] sm:$0xf]
      %v717 = vld [vmem:[%s5 + $0xe0] sm:$0xf]
      %v718 = vld [vmem:[%s5 + $0xe4] sm:$0xf]
      %v719 = vld [vmem:[%s5 + $0xe8] sm:$0xf]
      %v720 = vld [vmem:[%s5 + $0xec] sm:$0xf]
      %v721 = vld [vmem:[%s5 + $0xf0] sm:$0xf]
      %v722 = vld [vmem:[%s5 + $0xf4] sm:$0xf]
      %v723 = vld [vmem:[%s5 + $0xf8] sm:$0xf]
      %v724 = vld [vmem:[%s5 + $0xfc] sm:$0xf]
      %v725 = vld [vmem:[%s6] sm:$0x1]
      %v727 = vlaneseq
      %v728 = vshrl.u32 %v727, 7
      %v729 = vsub.s32 0, %v728
      %v730 = vrot.slane %v725, %v729
      %v796 = vunpack.c.l.b16 %v661
      %v797 = vunpack.c.l.b16 %v662
      %v798 = vunpack.c.l.b16 %v663
      %v799 = vunpack.c.l.b16 %v664
      %v800 = vunpack.c.l.b16 %v665
      %v801 = vunpack.c.l.b16 %v666
      %v802 = vunpack.c.l.b16 %v667
      %v803 = vunpack.c.l.b16 %v668
      %v804 = vunpack.c.l.b16 %v669
      %v805 = vunpack.c.l.b16 %v670
      %v806 = vunpack.c.l.b16 %v671
      %v807 = vunpack.c.l.b16 %v672
      %v808 = vunpack.c.l.b16 %v673
      %v809 = vunpack.c.l.b16 %v674
      %v810 = vunpack.c.l.b16 %v675
      %v811 = vunpack.c.l.b16 %v676
      %v812 = vunpack.c.l.b16 %v677
      %v813 = vunpack.c.l.b16 %v678
      %v814 = vunpack.c.l.b16 %v679
      %v815 = vunpack.c.l.b16 %v680
      %v816 = vunpack.c.l.b16 %v681
      %v817 = vunpack.c.l.b16 %v682
      %v818 = vunpack.c.l.b16 %v683
      %v819 = vunpack.c.l.b16 %v684
      %v820 = vunpack.c.l.b16 %v685
      %v821 = vunpack.c.l.b16 %v686
      %v822 = vunpack.c.l.b16 %v687
      %v823 = vunpack.c.l.b16 %v688
      %v824 = vunpack.c.l.b16 %v689
      %v825 = vunpack.c.l.b16 %v690
      %v826 = vunpack.c.l.b16 %v691
      %v827 = vunpack.c.l.b16 %v692
      %v828 = vunpack.c.l.b16 %v693
      %v829 = vunpack.c.l.b16 %v694
      %v830 = vunpack.c.l.b16 %v695
      %v831 = vunpack.c.l.b16 %v696
      %v832 = vunpack.c.l.b16 %v697
      %v833 = vunpack.c.l.b16 %v698
      %v834 = vunpack.c.l.b16 %v699
      %v835 = vunpack.c.l.b16 %v700
      %v836 = vunpack.c.l.b16 %v701
      %v837 = vunpack.c.l.b16 %v702
      %v838 = vunpack.c.l.b16 %v703
      %v839 = vunpack.c.l.b16 %v704
      %v840 = vunpack.c.l.b16 %v705
      %v841 = vunpack.c.l.b16 %v706
      %v842 = vunpack.c.l.b16 %v707
      %v843 = vunpack.c.l.b16 %v708
      %v844 = vunpack.c.l.b16 %v709
      %v845 = vunpack.c.l.b16 %v710
      %v846 = vunpack.c.l.b16 %v711
      %v847 = vunpack.c.l.b16 %v712
      %v848 = vunpack.c.l.b16 %v713
      %v849 = vunpack.c.l.b16 %v714
      %v850 = vunpack.c.l.b16 %v715
      %v851 = vunpack.c.l.b16 %v716
      %v852 = vunpack.c.l.b16 %v717
      %v853 = vunpack.c.l.b16 %v718
      %v854 = vunpack.c.l.b16 %v719
      %v855 = vunpack.c.l.b16 %v720
      %v856 = vunpack.c.l.b16 %v721
      %v857 = vunpack.c.l.b16 %v722
      %v858 = vunpack.c.l.b16 %v723
      %v859 = vunpack.c.l.b16 %v724
      %v860 = vpack.c.b16 %v797, %v796
      %v861 = vpack.c.b16 %v799, %v798
      %v862 = vpack.c.b16 %v801, %v800
      %v863 = vpack.c.b16 %v803, %v802
      %v864 = vpack.c.b16 %v805, %v804
      %v865 = vpack.c.b16 %v807, %v806
      %v866 = vpack.c.b16 %v809, %v808
      %v867 = vpack.c.b16 %v811, %v810
      %v868 = vpack.c.b16 %v813, %v812
      %v869 = vpack.c.b16 %v815, %v814
      %v870 = vpack.c.b16 %v817, %v816
      %v871 = vpack.c.b16 %v819, %v818
      %v872 = vpack.c.b16 %v821, %v820
      %v873 = vpack.c.b16 %v823, %v822
      %v874 = vpack.c.b16 %v825, %v824
      %v875 = vpack.c.b16 %v827, %v826
      %v876 = vpack.c.b16 %v829, %v828
      %v877 = vpack.c.b16 %v831, %v830
      %v878 = vpack.c.b16 %v833, %v832
      %v879 = vpack.c.b16 %v835, %v834
      %v880 = vpack.c.b16 %v837, %v836
      %v881 = vpack.c.b16 %v839, %v838
      %v882 = vpack.c.b16 %v841, %v840
      %v883 = vpack.c.b16 %v843, %v842
      %v884 = vpack.c.b16 %v845, %v844
      %v885 = vpack.c.b16 %v847, %v846
      %v886 = vpack.c.b16 %v849, %v848
      %v887 = vpack.c.b16 %v851, %v850
      %v888 = vpack.c.b16 %v853, %v852
      %v889 = vpack.c.b16 %v855, %v854
      %v890 = vpack.c.b16 %v857, %v856
      %v891 = vpack.c.b16 %v859, %v858
      %924 = vmatprep.subr.bf16.mxu0 0
      %925 = vmatpush1.bf16.msra.mxu0 %v867
      %926 = vmatprep.subr.bf16.mxu0 0
      %927 = vmatpush1.bf16.msra.mxu0 %v866
      %928 = vmatprep.subr.bf16.mxu0 0
      %929 = vmatpush1.bf16.msra.mxu0 %v865
      %930 = vmatprep.subr.bf16.mxu0 0
      %931 = vmatpush1.bf16.msra.mxu0 %v864
      %932 = vmatprep.subr.bf16.mxu0 0
      %933 = vmatpush1.bf16.msra.mxu0 %v863
      %934 = vmatprep.subr.bf16.mxu0 0
      %935 = vmatpush1.bf16.msra.mxu0 %v862
      %936 = vmatprep.subr.bf16.mxu0 0
      %937 = vmatpush1.bf16.msra.mxu0 %v861
      %938 = vmatprep.subr.bf16.mxu0 0
      %939 = vmatpush1.bf16.msra.mxu0 %v860
      %940 = vmatprep.subr.bf16.mxu0 0
      %941 = vmatpush2.bf16.msra.mxu0 %v875
      %942 = vmatprep.subr.bf16.mxu0 0
      %943 = vmatpush2.bf16.msra.mxu0 %v874
      %944 = vmatprep.subr.bf16.mxu0 0
      %945 = vmatpush2.bf16.msra.mxu0 %v873
      %946 = vmatprep.subr.bf16.mxu0 0
      %947 = vmatpush2.bf16.msra.mxu0 %v872
      %948 = vmatprep.subr.bf16.mxu0 0
      %949 = vmatpush2.bf16.msra.mxu0 %v871
      %950 = vmatprep.subr.bf16.mxu0 0
      %951 = vmatpush2.bf16.msra.mxu0 %v870
      %952 = vmatprep.subr.bf16.mxu0 0
      %953 = vmatpush2.bf16.msra.mxu0 %v869
      %954 = vmatprep.subr.bf16.mxu0 0
      %955 = vmatpush2.bf16.msra.mxu0 %v868
      %956 = vmatprep.mubr.bf16.mxu0 %v654
      %957 = vmatmul.mubr.bf16.gmra.mxu0 %v653
      %v958 = vpop.f32.mrf.mxu0
      %v959 = vadd.f32 %v730, %v958
      %v960 = vpop.f32.mrf.mxu0
      %v961 = vpop.f32.mrf.mxu0
      %v962 = vadd.f32 %v730, %v961
      %v963 = vpop.f32.mrf.mxu0
      %964 = vmatprep.mubr.bf16.mxu0 %v658
      %965 = vmatmul.mubr.bf16.gmra.mxu0 %v657
      %v966 = vpop.f32.mrf.mxu0
      %v967 = vadd.f32 %v730, %v966
      %v968 = vpop.f32.mrf.mxu0
      %v969 = vpop.f32.mrf.mxu0
      %v970 = vadd.f32 %v730, %v969
      %v971 = vpop.f32.mrf.mxu0
      %972 = vdwg.mxu0
      %973 = vmatprep.subr.bf16.mxu0 0
      %974 = vmatpush1.bf16.msra.mxu0 %v883
      %975 = vmatprep.subr.bf16.mxu0 0
      %976 = vmatpush1.bf16.msra.mxu0 %v882
      %977 = vmatprep.subr.bf16.mxu0 0
      %978 = vmatpush1.bf16.msra.mxu0 %v881
      %979 = vmatprep.subr.bf16.mxu0 0
      %980 = vmatpush1.bf16.msra.mxu0 %v880
      %981 = vmatprep.subr.bf16.mxu0 0
      %982 = vmatpush1.bf16.msra.mxu0 %v879
      %983 = vmatprep.subr.bf16.mxu0 0
      %984 = vmatpush1.bf16.msra.mxu0 %v878
      %985 = vmatprep.subr.bf16.mxu0 0
      %986 = vmatpush1.bf16.msra.mxu0 %v877
      %987 = vmatprep.subr.bf16.mxu0 0
      %988 = vmatpush1.bf16.msra.mxu0 %v876
      %989 = vmatprep.subr.bf16.mxu0 0
      %990 = vmatpush2.bf16.msra.mxu0 %v891
      %991 = vmatprep.subr.bf16.mxu0 0
      %992 = vmatpush2.bf16.msra.mxu0 %v890
      %993 = vmatprep.subr.bf16.mxu0 0
      %994 = vmatpush2.bf16.msra.mxu0 %v889
      %995 = vmatprep.subr.bf16.mxu0 0
      %996 = vmatpush2.bf16.msra.mxu0 %v888
      %997 = vmatprep.subr.bf16.mxu0 0
      %998 = vmatpush2.bf16.msra.mxu0 %v887
      %999 = vmatprep.subr.bf16.mxu0 0
      %1000 = vmatpush2.bf16.msra.mxu0 %v886
      %1001 = vmatprep.subr.bf16.mxu0 0
      %1002 = vmatpush2.bf16.msra.mxu0 %v885
      %1003 = vmatprep.subr.bf16.mxu0 0
      %1004 = vmatpush2.bf16.msra.mxu0 %v884
      %1005 = vmatprep.mubr.bf16.mxu0 %v656
      %1006 = vmatmul.mubr.bf16.gmra.mxu0 %v655
      %v1007 = vpop.f32.mrf.mxu0
      %v1008 = vadd.f32 %v959, %v1007
      %v1009 = vpop.f32.mrf.mxu0
      %v1010 = vpop.f32.mrf.mxu0
      %v1011 = vadd.f32 %v962, %v1010
      %v1012 = vpop.f32.mrf.mxu0
      %1013 = vmatprep.mubr.bf16.mxu0 %v660
      %1014 = vmatmul.mubr.bf16.gmra.mxu0 %v659
      %v1015 = vpop.f32.mrf.mxu0
      %v1016 = vadd.f32 %v967, %v1015
      %v1017 = vpop.f32.mrf.mxu0
      %v1018 = vpop.f32.mrf.mxu0
      %v1019 = vadd.f32 %v970, %v1018
      %v1020 = vpop.f32.mrf.mxu0
      %1021 = vdwg.mxu0
      %v1022 = vmul.f32 %v1008, 0.5
      %v1023 = vmul.f32 %v1011, 0.5
      %v1024 = vmul.f32 %v1016, 0.5
      %v1025 = vmul.f32 %v1019, 0.5
      %v1026 = vmul.f32 %v1022, 1.442695
      %v1027 = vpow.pop %v1026
      %v1028 = vmul.f32 %v1023, 1.442695
      %v1029 = vpow.pop %v1028
      %v1030 = vmul.f32 %v1024, 1.442695
      %v1031 = vpow.pop %v1030
      %v1032 = vmul.f32 %v1025, 1.442695
      %v1033 = vpow.pop %v1032
      %1038 = vrot.lane.b32.xlu0 %v1027, 120
      %v1039 = vpop.permute.xlu0 %1038
      %1040 = vrot.lane.b32.xlu0 %v1029, 120
      %v1041 = vpop.permute.xlu0 %1040
      %1042 = vrot.lane.b32.xlu0 %v1031, 120
      %v1043 = vpop.permute.xlu0 %1042
      %1044 = vrot.lane.b32.xlu0 %v1033, 120
      %v1045 = vpop.permute.xlu0 %1044
      %v1050 = vmul.f32 %v474, %v1039
      %v1051 = vmul.f32 %v475, %v1041
      %v1052 = vmul.f32 %v476, %v1043
      %v1053 = vmul.f32 %v477, %v1045
      %v1054 = vadd.f32 %v1008, %v1050
      %v1055 = vadd.f32 %v1011, %v1051
      %v1056 = vadd.f32 %v1016, %v1052
      %v1057 = vadd.f32 %v1019, %v1053
      %v1058 = vpack.c.bf16 %v1055, %v1054
      %v1059 = vpack.c.bf16 %v1057, %v1056
      %v1060 = vld [vmem:[%s7] sm:$0xff]
      %v1061 = vld [vmem:[%s7 + $0x8] sm:$0xff]
      %v1062 = vld [vmem:[%s8] sm:$0xff]
      %v1063 = vld [vmem:[%s8 + $0x8] sm:$0xff]
      %v1066 = vunpack.c.l.b16 %v1062
      %v1067 = vunpack.c.h.b16 %v1062
      %v1068 = vunpack.c.l.b16 %v1063
      %v1069 = vunpack.c.h.b16 %v1063
      %v1070 = vpack.c.b16 %v1066, %v1066
      %v1071 = vpack.c.b16 %v1067, %v1067
      %v1072 = vpack.c.b16 %v1068, %v1068
      %v1073 = vpack.c.b16 %v1069, %v1069
      %vm1074 = vcmask 64512
      %v1076 = vsel %vm1074, %v472, 0
      %v1079 = vsel %vm1074, %v473, 0
      %vm1081 = vcmask 1043456
      %v1083 = vsel %vm1081, %v1070, 0
      %v1086 = vsel %vm1081, %v1071, 0
      %v1089 = vsel %vm1081, %v1072, 0
      %v1092 = vsel %vm1081, %v1073, 0
      %1094 = vmatprep.subr.bf16.mxu0 0
      %1095 = vmatpush1.bf16.msra.mxu0 0
      %1096 = vmatprep.subr.bf16.mxu0 0
      %1097 = vmatpush1.bf16.msra.mxu0 0
      %1098 = vmatprep.subr.bf16.mxu0 0
      %1099 = vmatpush1.bf16.msra.mxu0 0
      %1100 = vmatprep.subr.bf16.mxu0 0
      %1101 = vmatpush1.bf16.msra.mxu0 0
      %1102 = vmatprep.subr.bf16.mxu0 0
      %1103 = vmatpush1.bf16.msra.mxu0 0
      %1104 = vmatprep.subr.bf16.mxu0 0
      %1105 = vmatpush1.bf16.msra.mxu0 0
      %1106 = vmatprep.subr.bf16.mxu0 0
      %1107 = vmatpush1.bf16.msra.mxu0 0
      %1108 = vmatprep.subr.bf16.mxu0 %v1086
      %1109 = vmatpush1.bf16.msra.mxu0 %v1083
      %1110 = vmatprep.subr.bf16.mxu0 0
      %1111 = vmatpush2.bf16.msra.mxu0 0
      %1112 = vmatprep.subr.bf16.mxu0 0
      %1113 = vmatpush2.bf16.msra.mxu0 0
      %1114 = vmatprep.subr.bf16.mxu0 0
      %1115 = vmatpush2.bf16.msra.mxu0 0
      %1116 = vmatprep.subr.bf16.mxu0 0
      %1117 = vmatpush2.bf16.msra.mxu0 0
      %1118 = vmatprep.subr.bf16.mxu0 0
      %1119 = vmatpush2.bf16.msra.mxu0 0
      %1120 = vmatprep.subr.bf16.mxu0 0
      %1121 = vmatpush2.bf16.msra.mxu0 0
      %1122 = vmatprep.subr.bf16.mxu0 0
      %1123 = vmatpush2.bf16.msra.mxu0 0
      %1124 = vmatprep.subr.bf16.mxu0 0
      %1125 = vmatpush2.bf16.msra.mxu0 0
      %1126 = vmatprep.mubr.bf16.mxu0 0
      %1127 = vmatmul.mubr.bf16.gmra.mxu0 %v1076
      %v1128 = vpop.f32.mrf.mxu0
      %v1129 = vadd.f32 0.0, %v1128
      %v1130 = vpop.f32.mrf.mxu0
      %v1131 = vadd.f32 0.0, %v1130
      %v1132 = vpop.f32.mrf.mxu0
      %v1133 = vadd.f32 0.0, %v1132
      %v1134 = vpop.f32.mrf.mxu0
      %v1135 = vadd.f32 0.0, %v1134
      %1136 = vmatprep.mubr.bf16.mxu0 0
      %1137 = vmatmul.mubr.bf16.gmra.mxu0 %v1079
      %v1138 = vpop.f32.mrf.mxu0
      %v1139 = vadd.f32 0.0, %v1138
      %v1140 = vpop.f32.mrf.mxu0
      %v1141 = vadd.f32 0.0, %v1140
      %v1142 = vpop.f32.mrf.mxu0
      %v1143 = vadd.f32 0.0, %v1142
      %v1144 = vpop.f32.mrf.mxu0
      %v1145 = vadd.f32 0.0, %v1144
      %1146 = vdwg.mxu0
      %1147 = vmatprep.subr.bf16.mxu0 0
      %1148 = vmatpush1.bf16.msra.mxu0 0
      %1149 = vmatprep.subr.bf16.mxu0 0
      %1150 = vmatpush1.bf16.msra.mxu0 0
      %1151 = vmatprep.subr.bf16.mxu0 0
      %1152 = vmatpush1.bf16.msra.mxu0 0
      %1153 = vmatprep.subr.bf16.mxu0 0
      %1154 = vmatpush1.bf16.msra.mxu0 0
      %1155 = vmatprep.subr.bf16.mxu0 0
      %1156 = vmatpush1.bf16.msra.mxu0 0
      %1157 = vmatprep.subr.bf16.mxu0 0
      %1158 = vmatpush1.bf16.msra.mxu0 0
      %1159 = vmatprep.subr.bf16.mxu0 0
      %1160 = vmatpush1.bf16.msra.mxu0 0
      %1161 = vmatprep.subr.bf16.mxu0 %v1092
      %1162 = vmatpush1.bf16.msra.mxu0 %v1089
      %1163 = vmatprep.subr.bf16.mxu0 0
      %1164 = vmatpush2.bf16.msra.mxu0 0
      %1165 = vmatprep.subr.bf16.mxu0 0
      %1166 = vmatpush2.bf16.msra.mxu0 0
      %1167 = vmatprep.subr.bf16.mxu0 0
      %1168 = vmatpush2.bf16.msra.mxu0 0
      %1169 = vmatprep.subr.bf16.mxu0 0
      %1170 = vmatpush2.bf16.msra.mxu0 0
      %1171 = vmatprep.subr.bf16.mxu0 0
      %1172 = vmatpush2.bf16.msra.mxu0 0
      %1173 = vmatprep.subr.bf16.mxu0 0
      %1174 = vmatpush2.bf16.msra.mxu0 0
      %1175 = vmatprep.subr.bf16.mxu0 0
      %1176 = vmatpush2.bf16.msra.mxu0 0
      %1177 = vmatprep.subr.bf16.mxu0 0
      %1178 = vmatpush2.bf16.msra.mxu0 0
      %1179 = vmatprep.mubr.bf16.mxu0 0
      %1180 = vmatmul.mubr.bf16.gmra.mxu0 %v1076
      %v1181 = vpop.f32.mrf.mxu0
      %v1182 = vadd.f32 0.0, %v1181
      %v1183 = vpop.f32.mrf.mxu0
      %v1184 = vadd.f32 0.0, %v1183
      %v1185 = vpop.f32.mrf.mxu0
      %v1186 = vadd.f32 0.0, %v1185
      %v1187 = vpop.f32.mrf.mxu0
      %v1188 = vadd.f32 0.0, %v1187
      %1189 = vmatprep.mubr.bf16.mxu0 0
      %1190 = vmatmul.mubr.bf16.gmra.mxu0 %v1079
      %v1191 = vpop.f32.mrf.mxu0
      %v1192 = vadd.f32 0.0, %v1191
      %v1193 = vpop.f32.mrf.mxu0
      %v1194 = vadd.f32 0.0, %v1193
      %v1195 = vpop.f32.mrf.mxu0
      %v1196 = vadd.f32 0.0, %v1195
      %v1197 = vpop.f32.mrf.mxu0
      %v1198 = vadd.f32 0.0, %v1197
      %1199 = vdwg.mxu0
      %v1202 = vunpack.c.l.b16 %v1060
      %v1203 = vunpack.c.h.b16 %v1060
      %v1204 = vunpack.c.l.b16 %v1061
      %v1205 = vunpack.c.h.b16 %v1061
      %v1206 = vpack.c.b16 %v1202, %v1202
      %v1207 = vpack.c.b16 %v1203, %v1203
      %v1208 = vpack.c.b16 %v1204, %v1204
      %v1209 = vpack.c.b16 %v1205, %v1205
      %v1211 = vsel %vm1074, %v1058, 0
      %v1214 = vsel %vm1074, %v1059, 0
      %v1217 = vsel %vm1081, %v1206, 0
      %v1220 = vsel %vm1081, %v1207, 0
      %v1223 = vsel %vm1081, %v1208, 0
      %v1226 = vsel %vm1081, %v1209, 0
      %1228 = vmatprep.subr.bf16.mxu0 0
      %1229 = vmatpush1.bf16.msra.mxu0 0
      %1230 = vmatprep.subr.bf16.mxu0 0
      %1231 = vmatpush1.bf16.msra.mxu0 0
      %1232 = vmatprep.subr.bf16.mxu0 0
      %1233 = vmatpush1.bf16.msra.mxu0 0
      %1234 = vmatprep.subr.bf16.mxu0 0
      %1235 = vmatpush1.bf16.msra.mxu0 0
      %1236 = vmatprep.subr.bf16.mxu0 0
      %1237 = vmatpush1.bf16.msra.mxu0 0
      %1238 = vmatprep.subr.bf16.mxu0 0
      %1239 = vmatpush1.bf16.msra.mxu0 0
      %1240 = vmatprep.subr.bf16.mxu0 0
      %1241 = vmatpush1.bf16.msra.mxu0 0
      %1242 = vmatprep.subr.bf16.mxu0 %v1220
      %1243 = vmatpush1.bf16.msra.mxu0 %v1217
      %1244 = vmatprep.subr.bf16.mxu0 0
      %1245 = vmatpush2.bf16.msra.mxu0 0
      %1246 = vmatprep.subr.bf16.mxu0 0
      %1247 = vmatpush2.bf16.msra.mxu0 0
      %1248 = vmatprep.subr.bf16.mxu0 0
      %1249 = vmatpush2.bf16.msra.mxu0 0
      %1250 = vmatprep.subr.bf16.mxu0 0
      %1251 = vmatpush2.bf16.msra.mxu0 0
      %1252 = vmatprep.subr.bf16.mxu0 0
      %1253 = vmatpush2.bf16.msra.mxu0 0
      %1254 = vmatprep.subr.bf16.mxu0 0
      %1255 = vmatpush2.bf16.msra.mxu0 0
      %1256 = vmatprep.subr.bf16.mxu0 0
      %1257 = vmatpush2.bf16.msra.mxu0 0
      %1258 = vmatprep.subr.bf16.mxu0 0
      %1259 = vmatpush2.bf16.msra.mxu0 0
      %1260 = vmatprep.mubr.bf16.mxu0 0
      %1261 = vmatmul.mubr.bf16.gmra.mxu0 %v1211
      %v1262 = vpop.f32.mrf.mxu0
      %v1263 = vadd.f32 %v1129, %v1262
      %v1264 = vpop.f32.mrf.mxu0
      %v1265 = vadd.f32 %v1131, %v1264
      %v1266 = vpop.f32.mrf.mxu0
      %v1267 = vadd.f32 %v1133, %v1266
      %v1268 = vpop.f32.mrf.mxu0
      %v1269 = vadd.f32 %v1135, %v1268
      %1270 = vmatprep.mubr.bf16.mxu0 0
      %1271 = vmatmul.mubr.bf16.gmra.mxu0 %v1214
      %v1272 = vpop.f32.mrf.mxu0
      %v1273 = vadd.f32 %v1139, %v1272
      %v1274 = vpop.f32.mrf.mxu0
      %v1275 = vadd.f32 %v1141, %v1274
      %v1276 = vpop.f32.mrf.mxu0
      %v1277 = vadd.f32 %v1143, %v1276
      %v1278 = vpop.f32.mrf.mxu0
      %v1279 = vadd.f32 %v1145, %v1278
      %1280 = vdwg.mxu0
      %1281 = vmatprep.subr.bf16.mxu0 0
      %1282 = vmatpush1.bf16.msra.mxu0 0
      %1283 = vmatprep.subr.bf16.mxu0 0
      %1284 = vmatpush1.bf16.msra.mxu0 0
      %1285 = vmatprep.subr.bf16.mxu0 0
      %1286 = vmatpush1.bf16.msra.mxu0 0
      %1287 = vmatprep.subr.bf16.mxu0 0
      %1288 = vmatpush1.bf16.msra.mxu0 0
      %1289 = vmatprep.subr.bf16.mxu0 0
      %1290 = vmatpush1.bf16.msra.mxu0 0
      %1291 = vmatprep.subr.bf16.mxu0 0
      %1292 = vmatpush1.bf16.msra.mxu0 0
      %1293 = vmatprep.subr.bf16.mxu0 0
      %1294 = vmatpush1.bf16.msra.mxu0 0
      %1295 = vmatprep.subr.bf16.mxu0 %v1226
      %1296 = vmatpush1.bf16.msra.mxu0 %v1223
      %1297 = vmatprep.subr.bf16.mxu0 0
      %1298 = vmatpush2.bf16.msra.mxu0 0
      %1299 = vmatprep.subr.bf16.mxu0 0
      %1300 = vmatpush2.bf16.msra.mxu0 0
      %1301 = vmatprep.subr.bf16.mxu0 0
      %1302 = vmatpush2.bf16.msra.mxu0 0
      %1303 = vmatprep.subr.bf16.mxu0 0
      %1304 = vmatpush2.bf16.msra.mxu0 0
      %1305 = vmatprep.subr.bf16.mxu0 0
      %1306 = vmatpush2.bf16.msra.mxu0 0
      %1307 = vmatprep.subr.bf16.mxu0 0
      %1308 = vmatpush2.bf16.msra.mxu0 0
      %1309 = vmatprep.subr.bf16.mxu0 0
      %1310 = vmatpush2.bf16.msra.mxu0 0
      %1311 = vmatprep.subr.bf16.mxu0 0
      %1312 = vmatpush2.bf16.msra.mxu0 0
      %1313 = vmatprep.mubr.bf16.mxu0 0
      %1314 = vmatmul.mubr.bf16.gmra.mxu0 %v1211
      %v1315 = vpop.f32.mrf.mxu0
      %v1316 = vadd.f32 %v1182, %v1315
      %v1317 = vpop.f32.mrf.mxu0
      %v1318 = vadd.f32 %v1184, %v1317
      %v1319 = vpop.f32.mrf.mxu0
      %v1320 = vadd.f32 %v1186, %v1319
      %v1321 = vpop.f32.mrf.mxu0
      %v1322 = vadd.f32 %v1188, %v1321
      %1323 = vmatprep.mubr.bf16.mxu0 0
      %1324 = vmatmul.mubr.bf16.gmra.mxu0 %v1214
      %v1325 = vpop.f32.mrf.mxu0
      %v1326 = vadd.f32 %v1192, %v1325
      %v1327 = vpop.f32.mrf.mxu0
      %v1328 = vadd.f32 %v1194, %v1327
      %v1329 = vpop.f32.mrf.mxu0
      %v1330 = vadd.f32 %v1196, %v1329
      %v1331 = vpop.f32.mrf.mxu0
      %v1332 = vadd.f32 %v1198, %v1331
      %1333 = vdwg.mxu0
      %v1334 = vld [vmem:[%s9] sm:$0xf]
      %v1336 = vlaneseq
      %v1337 = vshrl.u32 %v1336, 7
      %v1338 = vsub.s32 0, %v1337
      %v1339 = vrot.slane %v1334, %v1338
      %v1340 = vlaneseq
      %v1341 = vshrl.u32 %v1340, 7
      %v1342 = vsub.s32 1, %v1341
      %v1343 = vrot.slane %v1334, %v1342
      %v1344 = vlaneseq
      %v1345 = vshrl.u32 %v1344, 7
      %v1346 = vsub.s32 2, %v1345
      %v1347 = vrot.slane %v1334, %v1346
      %v1348 = vlaneseq
      %v1349 = vshrl.u32 %v1348, 7
      %v1350 = vsub.s32 3, %v1349
      %v1351 = vrot.slane %v1334, %v1350
      %v1356 = vadd.f32 %v1263, %v1339
      %v1357 = vadd.f32 %v1265, %v1343
      %v1358 = vadd.f32 %v1316, %v1347
      %v1359 = vadd.f32 %v1318, %v1351
      %v1360 = vadd.f32 %v1267, %v1339
      %v1361 = vadd.f32 %v1269, %v1343
      %v1362 = vadd.f32 %v1320, %v1347
      %v1363 = vadd.f32 %v1322, %v1351
      %v1364 = vadd.f32 %v1273, %v1339
      %v1365 = vadd.f32 %v1275, %v1343
      %v1366 = vadd.f32 %v1326, %v1347
      %v1367 = vadd.f32 %v1328, %v1351
      %v1368 = vadd.f32 %v1277, %v1339
      %v1369 = vadd.f32 %v1279, %v1343
      %v1370 = vadd.f32 %v1330, %v1347
      %v1371 = vadd.f32 %v1332, %v1351
      %v1372 = vmax.f32 %v1356, 0.0
      %v1373 = vmax.f32 %v1357, 0.0
      %v1374 = vmax.f32 %v1358, 0.0
      %v1375 = vmax.f32 %v1359, 0.0
      %v1376 = vmax.f32 %v1360, 0.0
      %v1377 = vmax.f32 %v1361, 0.0
      %v1378 = vmax.f32 %v1362, 0.0
      %v1379 = vmax.f32 %v1363, 0.0
      %v1380 = vmax.f32 %v1364, 0.0
      %v1381 = vmax.f32 %v1365, 0.0
      %v1382 = vmax.f32 %v1366, 0.0
      %v1383 = vmax.f32 %v1367, 0.0
      %v1384 = vmax.f32 %v1368, 0.0
      %v1385 = vmax.f32 %v1369, 0.0
      %v1386 = vmax.f32 %v1370, 0.0
      %v1387 = vmax.f32 %v1371, 0.0
      %v1388 = vpack.c.bf16 %v1376, %v1372
      %v1389 = vpack.c.bf16 %v1377, %v1373
      %v1390 = vpack.c.bf16 %v1378, %v1374
      %v1391 = vpack.c.bf16 %v1379, %v1375
      %v1392 = vpack.c.bf16 %v1384, %v1380
      %v1393 = vpack.c.bf16 %v1385, %v1381
      %v1394 = vpack.c.bf16 %v1386, %v1382
      %v1395 = vpack.c.bf16 %v1387, %v1383
      %v1396 = vld [vmem:[%s10] sm:$0xf]
      %v1397 = vld [vmem:[%s10 + $0x4] sm:$0xf]
      %v1398 = vld [vmem:[%s10 + $0x8] sm:$0xf]
      %v1399 = vld [vmem:[%s10 + $0xc] sm:$0xf]
      %v1400 = vld [vmem:[%s10 + $0x10] sm:$0xf]
      %v1401 = vld [vmem:[%s10 + $0x14] sm:$0xf]
      %v1402 = vld [vmem:[%s10 + $0x18] sm:$0xf]
      %v1403 = vld [vmem:[%s10 + $0x1c] sm:$0xf]
      %v1404 = vld [vmem:[%s10 + $0x20] sm:$0xf]
      %v1405 = vld [vmem:[%s10 + $0x24] sm:$0xf]
      %v1406 = vld [vmem:[%s10 + $0x28] sm:$0xf]
      %v1407 = vld [vmem:[%s10 + $0x2c] sm:$0xf]
      %v1408 = vld [vmem:[%s10 + $0x30] sm:$0xf]
      %v1409 = vld [vmem:[%s10 + $0x34] sm:$0xf]
      %v1410 = vld [vmem:[%s10 + $0x38] sm:$0xf]
      %v1411 = vld [vmem:[%s10 + $0x3c] sm:$0xf]
      %v1412 = vld [vmem:[%s10 + $0x40] sm:$0xf]
      %v1413 = vld [vmem:[%s10 + $0x44] sm:$0xf]
      %v1414 = vld [vmem:[%s10 + $0x48] sm:$0xf]
      %v1415 = vld [vmem:[%s10 + $0x4c] sm:$0xf]
      %v1416 = vld [vmem:[%s10 + $0x50] sm:$0xf]
      %v1417 = vld [vmem:[%s10 + $0x54] sm:$0xf]
      %v1418 = vld [vmem:[%s10 + $0x58] sm:$0xf]
      %v1419 = vld [vmem:[%s10 + $0x5c] sm:$0xf]
      %v1420 = vld [vmem:[%s10 + $0x60] sm:$0xf]
      %v1421 = vld [vmem:[%s10 + $0x64] sm:$0xf]
      %v1422 = vld [vmem:[%s10 + $0x68] sm:$0xf]
      %v1423 = vld [vmem:[%s10 + $0x6c] sm:$0xf]
      %v1424 = vld [vmem:[%s10 + $0x70] sm:$0xf]
      %v1425 = vld [vmem:[%s10 + $0x74] sm:$0xf]
      %v1426 = vld [vmem:[%s10 + $0x78] sm:$0xf]
      %v1427 = vld [vmem:[%s10 + $0x7c] sm:$0xf]
      %v1428 = vld [vmem:[%s10 + $0x80] sm:$0xf]
      %v1429 = vld [vmem:[%s10 + $0x84] sm:$0xf]
      %v1430 = vld [vmem:[%s10 + $0x88] sm:$0xf]
      %v1431 = vld [vmem:[%s10 + $0x8c] sm:$0xf]
      %v1432 = vld [vmem:[%s10 + $0x90] sm:$0xf]
      %v1433 = vld [vmem:[%s10 + $0x94] sm:$0xf]
      %v1434 = vld [vmem:[%s10 + $0x98] sm:$0xf]
      %v1435 = vld [vmem:[%s10 + $0x9c] sm:$0xf]
      %v1436 = vld [vmem:[%s10 + $0xa0] sm:$0xf]
      %v1437 = vld [vmem:[%s10 + $0xa4] sm:$0xf]
      %v1438 = vld [vmem:[%s10 + $0xa8] sm:$0xf]
      %v1439 = vld [vmem:[%s10 + $0xac] sm:$0xf]
      %v1440 = vld [vmem:[%s10 + $0xb0] sm:$0xf]
      %v1441 = vld [vmem:[%s10 + $0xb4] sm:$0xf]
      %v1442 = vld [vmem:[%s10 + $0xb8] sm:$0xf]
      %v1443 = vld [vmem:[%s10 + $0xbc] sm:$0xf]
      %v1444 = vld [vmem:[%s10 + $0xc0] sm:$0xf]
      %v1445 = vld [vmem:[%s10 + $0xc4] sm:$0xf]
      %v1446 = vld [vmem:[%s10 + $0xc8] sm:$0xf]
      %v1447 = vld [vmem:[%s10 + $0xcc] sm:$0xf]
      %v1448 = vld [vmem:[%s10 + $0xd0] sm:$0xf]
      %v1449 = vld [vmem:[%s10 + $0xd4] sm:$0xf]
      %v1450 = vld [vmem:[%s10 + $0xd8] sm:$0xf]
      %v1451 = vld [vmem:[%s10 + $0xdc] sm:$0xf]
      %v1452 = vld [vmem:[%s10 + $0xe0] sm:$0xf]
      %v1453 = vld [vmem:[%s10 + $0xe4] sm:$0xf]
      %v1454 = vld [vmem:[%s10 + $0xe8] sm:$0xf]
      %v1455 = vld [vmem:[%s10 + $0xec] sm:$0xf]
      %v1456 = vld [vmem:[%s10 + $0xf0] sm:$0xf]
      %v1457 = vld [vmem:[%s10 + $0xf4] sm:$0xf]
      %v1458 = vld [vmem:[%s10 + $0xf8] sm:$0xf]
      %v1459 = vld [vmem:[%s10 + $0xfc] sm:$0xf]
      %v1460 = vld [vmem:[%s11] sm:$0x1]
      %v1462 = vlaneseq
      %v1463 = vshrl.u32 %v1462, 7
      %v1464 = vsub.s32 0, %v1463
      %v1465 = vrot.slane %v1460, %v1464
      %v1531 = vunpack.c.l.b16 %v1396
      %v1532 = vunpack.c.l.b16 %v1397
      %v1533 = vunpack.c.l.b16 %v1398
      %v1534 = vunpack.c.l.b16 %v1399
      %v1535 = vunpack.c.l.b16 %v1400
      %v1536 = vunpack.c.l.b16 %v1401
      %v1537 = vunpack.c.l.b16 %v1402
      %v1538 = vunpack.c.l.b16 %v1403
      %v1539 = vunpack.c.l.b16 %v1404
      %v1540 = vunpack.c.l.b16 %v1405
      %v1541 = vunpack.c.l.b16 %v1406
      %v1542 = vunpack.c.l.b16 %v1407
      %v1543 = vunpack.c.l.b16 %v1408
      %v1544 = vunpack.c.l.b16 %v1409
      %v1545 = vunpack.c.l.b16 %v1410
      %v1546 = vunpack.c.l.b16 %v1411
      %v1547 = vunpack.c.l.b16 %v1412
      %v1548 = vunpack.c.l.b16 %v1413
      %v1549 = vunpack.c.l.b16 %v1414
      %v1550 = vunpack.c.l.b16 %v1415
      %v1551 = vunpack.c.l.b16 %v1416
      %v1552 = vunpack.c.l.b16 %v1417
      %v1553 = vunpack.c.l.b16 %v1418
      %v1554 = vunpack.c.l.b16 %v1419
      %v1555 = vunpack.c.l.b16 %v1420
      %v1556 = vunpack.c.l.b16 %v1421
      %v1557 = vunpack.c.l.b16 %v1422
      %v1558 = vunpack.c.l.b16 %v1423
      %v1559 = vunpack.c.l.b16 %v1424
      %v1560 = vunpack.c.l.b16 %v1425
      %v1561 = vunpack.c.l.b16 %v1426
      %v1562 = vunpack.c.l.b16 %v1427
      %v1563 = vunpack.c.l.b16 %v1428
      %v1564 = vunpack.c.l.b16 %v1429
      %v1565 = vunpack.c.l.b16 %v1430
      %v1566 = vunpack.c.l.b16 %v1431
      %v1567 = vunpack.c.l.b16 %v1432
      %v1568 = vunpack.c.l.b16 %v1433
      %v1569 = vunpack.c.l.b16 %v1434
      %v1570 = vunpack.c.l.b16 %v1435
      %v1571 = vunpack.c.l.b16 %v1436
      %v1572 = vunpack.c.l.b16 %v1437
      %v1573 = vunpack.c.l.b16 %v1438
      %v1574 = vunpack.c.l.b16 %v1439
      %v1575 = vunpack.c.l.b16 %v1440
      %v1576 = vunpack.c.l.b16 %v1441
      %v1577 = vunpack.c.l.b16 %v1442
      %v1578 = vunpack.c.l.b16 %v1443
      %v1579 = vunpack.c.l.b16 %v1444
      %v1580 = vunpack.c.l.b16 %v1445
      %v1581 = vunpack.c.l.b16 %v1446
      %v1582 = vunpack.c.l.b16 %v1447
      %v1583 = vunpack.c.l.b16 %v1448
      %v1584 = vunpack.c.l.b16 %v1449
      %v1585 = vunpack.c.l.b16 %v1450
      %v1586 = vunpack.c.l.b16 %v1451
      %v1587 = vunpack.c.l.b16 %v1452
      %v1588 = vunpack.c.l.b16 %v1453
      %v1589 = vunpack.c.l.b16 %v1454
      %v1590 = vunpack.c.l.b16 %v1455
      %v1591 = vunpack.c.l.b16 %v1456
      %v1592 = vunpack.c.l.b16 %v1457
      %v1593 = vunpack.c.l.b16 %v1458
      %v1594 = vunpack.c.l.b16 %v1459
      %v1595 = vpack.c.b16 %v1532, %v1531
      %v1596 = vpack.c.b16 %v1534, %v1533
      %v1597 = vpack.c.b16 %v1536, %v1535
      %v1598 = vpack.c.b16 %v1538, %v1537
      %v1599 = vpack.c.b16 %v1540, %v1539
      %v1600 = vpack.c.b16 %v1542, %v1541
      %v1601 = vpack.c.b16 %v1544, %v1543
      %v1602 = vpack.c.b16 %v1546, %v1545
      %v1603 = vpack.c.b16 %v1548, %v1547
      %v1604 = vpack.c.b16 %v1550, %v1549
      %v1605 = vpack.c.b16 %v1552, %v1551
      %v1606 = vpack.c.b16 %v1554, %v1553
      %v1607 = vpack.c.b16 %v1556, %v1555
      %v1608 = vpack.c.b16 %v1558, %v1557
      %v1609 = vpack.c.b16 %v1560, %v1559
      %v1610 = vpack.c.b16 %v1562, %v1561
      %v1611 = vpack.c.b16 %v1564, %v1563
      %v1612 = vpack.c.b16 %v1566, %v1565
      %v1613 = vpack.c.b16 %v1568, %v1567
      %v1614 = vpack.c.b16 %v1570, %v1569
      %v1615 = vpack.c.b16 %v1572, %v1571
      %v1616 = vpack.c.b16 %v1574, %v1573
      %v1617 = vpack.c.b16 %v1576, %v1575
      %v1618 = vpack.c.b16 %v1578, %v1577
      %v1619 = vpack.c.b16 %v1580, %v1579
      %v1620 = vpack.c.b16 %v1582, %v1581
      %v1621 = vpack.c.b16 %v1584, %v1583
      %v1622 = vpack.c.b16 %v1586, %v1585
      %v1623 = vpack.c.b16 %v1588, %v1587
      %v1624 = vpack.c.b16 %v1590, %v1589
      %v1625 = vpack.c.b16 %v1592, %v1591
      %v1626 = vpack.c.b16 %v1594, %v1593
      %1659 = vmatprep.subr.bf16.mxu0 0
      %1660 = vmatpush1.bf16.msra.mxu0 %v1602
      %1661 = vmatprep.subr.bf16.mxu0 0
      %1662 = vmatpush1.bf16.msra.mxu0 %v1601
      %1663 = vmatprep.subr.bf16.mxu0 0
      %1664 = vmatpush1.bf16.msra.mxu0 %v1600
      %1665 = vmatprep.subr.bf16.mxu0 0
      %1666 = vmatpush1.bf16.msra.mxu0 %v1599
      %1667 = vmatprep.subr.bf16.mxu0 0
      %1668 = vmatpush1.bf16.msra.mxu0 %v1598
      %1669 = vmatprep.subr.bf16.mxu0 0
      %1670 = vmatpush1.bf16.msra.mxu0 %v1597
      %1671 = vmatprep.subr.bf16.mxu0 0
      %1672 = vmatpush1.bf16.msra.mxu0 %v1596
      %1673 = vmatprep.subr.bf16.mxu0 0
      %1674 = vmatpush1.bf16.msra.mxu0 %v1595
      %1675 = vmatprep.subr.bf16.mxu0 0
      %1676 = vmatpush2.bf16.msra.mxu0 %v1610
      %1677 = vmatprep.subr.bf16.mxu0 0
      %1678 = vmatpush2.bf16.msra.mxu0 %v1609
      %1679 = vmatprep.subr.bf16.mxu0 0
      %1680 = vmatpush2.bf16.msra.mxu0 %v1608
      %1681 = vmatprep.subr.bf16.mxu0 0
      %1682 = vmatpush2.bf16.msra.mxu0 %v1607
      %1683 = vmatprep.subr.bf16.mxu0 0
      %1684 = vmatpush2.bf16.msra.mxu0 %v1606
      %1685 = vmatprep.subr.bf16.mxu0 0
      %1686 = vmatpush2.bf16.msra.mxu0 %v1605
      %1687 = vmatprep.subr.bf16.mxu0 0
      %1688 = vmatpush2.bf16.msra.mxu0 %v1604
      %1689 = vmatprep.subr.bf16.mxu0 0
      %1690 = vmatpush2.bf16.msra.mxu0 %v1603
      %1691 = vmatprep.mubr.bf16.mxu0 %v1389
      %1692 = vmatmul.mubr.bf16.gmra.mxu0 %v1388
      %v1693 = vpop.f32.mrf.mxu0
      %v1694 = vadd.f32 %v1465, %v1693
      %v1695 = vpop.f32.mrf.mxu0
      %v1696 = vpop.f32.mrf.mxu0
      %v1697 = vadd.f32 %v1465, %v1696
      %v1698 = vpop.f32.mrf.mxu0
      %1699 = vmatprep.mubr.bf16.mxu0 %v1393
      %1700 = vmatmul.mubr.bf16.gmra.mxu0 %v1392
      %v1701 = vpop.f32.mrf.mxu0
      %v1702 = vadd.f32 %v1465, %v1701
      %v1703 = vpop.f32.mrf.mxu0
      %v1704 = vpop.f32.mrf.mxu0
      %v1705 = vadd.f32 %v1465, %v1704
      %v1706 = vpop.f32.mrf.mxu0
      %1707 = vdwg.mxu0
      %1708 = vmatprep.subr.bf16.mxu0 0
      %1709 = vmatpush1.bf16.msra.mxu0 %v1618
      %1710 = vmatprep.subr.bf16.mxu0 0
      %1711 = vmatpush1.bf16.msra.mxu0 %v1617
      %1712 = vmatprep.subr.bf16.mxu0 0
      %1713 = vmatpush1.bf16.msra.mxu0 %v1616
      %1714 = vmatprep.subr.bf16.mxu0 0
      %1715 = vmatpush1.bf16.msra.mxu0 %v1615
      %1716 = vmatprep.subr.bf16.mxu0 0
      %1717 = vmatpush1.bf16.msra.mxu0 %v1614
      %1718 = vmatprep.subr.bf16.mxu0 0
      %1719 = vmatpush1.bf16.msra.mxu0 %v1613
      %1720 = vmatprep.subr.bf16.mxu0 0
      %1721 = vmatpush1.bf16.msra.mxu0 %v1612
      %1722 = vmatprep.subr.bf16.mxu0 0
      %1723 = vmatpush1.bf16.msra.mxu0 %v1611
      %1724 = vmatprep.subr.bf16.mxu0 0
      %1725 = vmatpush2.bf16.msra.mxu0 %v1626
      %1726 = vmatprep.subr.bf16.mxu0 0
      %1727 = vmatpush2.bf16.msra.mxu0 %v1625
      %1728 = vmatprep.subr.bf16.mxu0 0
      %1729 = vmatpush2.bf16.msra.mxu0 %v1624
      %1730 = vmatprep.subr.bf16.mxu0 0
      %1731 = vmatpush2.bf16.msra.mxu0 %v1623
      %1732 = vmatprep.subr.bf16.mxu0 0
      %1733 = vmatpush2.bf16.msra.mxu0 %v1622
      %1734 = vmatprep.subr.bf16.mxu0 0
      %1735 = vmatpush2.bf16.msra.mxu0 %v1621
      %1736 = vmatprep.subr.bf16.mxu0 0
      %1737 = vmatpush2.bf16.msra.mxu0 %v1620
      %1738 = vmatprep.subr.bf16.mxu0 0
      %1739 = vmatpush2.bf16.msra.mxu0 %v1619
      %1740 = vmatprep.mubr.bf16.mxu0 %v1391
      %1741 = vmatmul.mubr.bf16.gmra.mxu0 %v1390
      %v1742 = vpop.f32.mrf.mxu0
      %v1743 = vadd.f32 %v1694, %v1742
      %v1744 = vpop.f32.mrf.mxu0
      %v1745 = vpop.f32.mrf.mxu0
      %v1746 = vadd.f32 %v1697, %v1745
      %v1747 = vpop.f32.mrf.mxu0
      %1748 = vmatprep.mubr.bf16.mxu0 %v1395
      %1749 = vmatmul.mubr.bf16.gmra.mxu0 %v1394
      %v1750 = vpop.f32.mrf.mxu0
      %v1751 = vadd.f32 %v1702, %v1750
      %v1752 = vpop.f32.mrf.mxu0
      %v1753 = vpop.f32.mrf.mxu0
      %v1754 = vadd.f32 %v1705, %v1753
      %v1755 = vpop.f32.mrf.mxu0
      %1756 = vdwg.mxu0
      %1761 = vrot.lane.b32.xlu0 %v1008, 16
      %v1762 = vpop.permute.xlu0 %1761
      %1763 = vrot.lane.b32.xlu0 %v1011, 16
      %v1764 = vpop.permute.xlu0 %1763
      %1765 = vrot.lane.b32.xlu0 %v1016, 16
      %v1766 = vpop.permute.xlu0 %1765
      %1767 = vrot.lane.b32.xlu0 %v1019, 16
      %v1768 = vpop.permute.xlu0 %1767
      %v1773 = vsel %vm524, %v1743, %v1762
      %v1774 = vsel %vm524, %v1746, %v1764
      %v1775 = vsel %vm524, %v1751, %v1766
      %v1776 = vsel %vm524, %v1754, %v1768
      %vm1777 = vcmask 261120
      %1778 = vst.msk [vmem:[%s459] sm:$0xff] %vm1777, %v1773
      %1779 = vst.msk [vmem:[%s459 + $0x8] sm:$0xff] %vm1777, %v1774
      %1780 = vst.msk [vmem:[%s459 + $0x10] sm:$0xff] %vm1777, %v1775
      %1781 = vst.msk [vmem:[%s459 + $0x18] sm:$0xff] %vm1777, %v1776
      %s1782 = smul.u32 4, %s23
      %p1783 = scmp.lt.s32.totalorder %s1782, 7
      %s1784 = scalar_select %p1783, %s1782, 7
      %s1785 = smul.addr %s1784, 8
      %s1786 = scalar_lea.vmem %s12, %s1785
      // Predicated region
      $region69: #{cvae_forward.1} parent=67 // pred_check
        %p1787 = pneg %p308
      $region70: #{cvae_forward.1} parent=67 // pred_check_branch
        %1789 = sbr.rel (%p1787) target = $region72
      $region71: #{cvae_forward.1} parent=67 // pred_region
        %s1790 = smul.u32 4, %s23
      $region72: #{cvae_forward.1} parent=67 // pred_fallthru
        _
    $region68: #{cvae_forward.1} parent=5 // pred_fallthru
      _
    %p1791 = scmp.le.s32.totalorder 2, %s18
    // Predicated region
    $region73: #{cvae_forward.1} parent=5 // pred_check
      %p1792 = pneg %p1791
    $region74: #{cvae_forward.1} parent=5 // pred_check_branch
      %1794 = sbr.rel (%p1792) target = $region76
    $region75: #{cvae_forward.1} parent=5 // pred_region
      %s1795 = ssub.s32 %s18, 2
      // Predicated region
      $region77: #{cvae_forward.1} parent=75 // pred_check
        %p1796 = pneg %p314
      $region78: #{cvae_forward.1} parent=75 // pred_check_branch
        %1798 = sbr.rel (%p1796) target = $region80
      $region79: #{cvae_forward.1} parent=75 // pred_region
        %s1799 = smul.u32 4, %s24
        %p1800 = scmp.lt.s32.totalorder %s1799, 7
        %s1801 = scalar_select %p1800, %s1799, 7
        %s1802 = smul.addr %s1801, 8
        %s1803 = scalar_lea.vmem %s12, %s1802
      $region80: #{cvae_forward.1} parent=75 // pred_fallthru
        _
    $region76: #{cvae_forward.1} parent=5 // pred_fallthru
      _
  $region6: #{cvae_forward.1} parent=0 // loop_footer
    %s22 = sadd.s32 1, %s18
  $region7: #{cvae_forward.1} parent=0 // loop_footer_branch
    %17 = sbr.rel target = $region3
  $region8: #{cvae_forward.1} parent=0 // loop_exit
    _

</llo_original>
